<compile_context>
chip_gen: v6e
topology: v6e:2x2x1
jax: 0.10.0
libtpu: 0.0.40
codegen_flags: <defaults>
</compile_context>

<pallas_src>
import jax
import jax.numpy as jnp
from jax import lax
from jax.experimental import pallas as pl
from jax.experimental.pallas import tpu as pltpu


def _decoder_kernel(emb_ref, h0_ref, c0_ref, enc_ref, attnw_ref, cov_ref,
                    wih_ref, whh_ref, b_ref,
                    wenc_ref, benc_ref, wdec_ref, bdec_ref, we_ref, be_ref,
                    w1_ref, b1_ref, w2_ref, b2_ref,
                    pvocab_ref, hn_ref, cn_ref, at_ref, covout_ref,
                    a1_scratch):
    H = hn_ref.shape[1]
    T = emb_ref.shape[0]

    # coverage_vec = coverage_vec + attention_weights  (pure VPU, off the chain)
    covout_ref[...] = cov_ref[...] + attnw_ref[...]

    # ----------------------- LSTM (batch_first, batch = 1) -----------------------
    # Hoisted input projection: one MXU matmul covering all T timesteps.
    x_proj = (jnp.dot(emb_ref[...], wih_ref[...],
                      preferred_element_type=jnp.float32) + b_ref[...])     # (T, 4H)

    whh = whh_ref[...]                                                      # (H, 4H)
    h = h0_ref[...]                                                         # (1, H)
    c = c0_ref[...]                                                         # (1, H)
    # T is tiny and static -> static unroll keeps all slices static.
    for t in range(T):
        gates = x_proj[t:t + 1, :] + jnp.dot(
            h, whh, preferred_element_type=jnp.float32)                     # (1, 4H)
        # Full-width EUP activations, then static lane slices
        # (PyTorch gate order i, f, g, o).
        sig = jax.nn.sigmoid(gates)
        tah = jnp.tanh(gates)
        i_g = sig[:, 0:H]
        f_g = sig[:, H:2 * H]
        g_g = tah[:, 2 * H:3 * H]
        o_g = sig[:, 3 * H:4 * H]
        c = f_g * c + i_g * g_g
        h = o_g * jnp.tanh(c)
    hn_ref[...] = h
    cn_ref[...] = c

    # ----------------------------- attention -----------------------------
    s_t = h                                                                 # (1, H)
    enc = enc_ref[...]                                                      # (L, 2H)
    enc_proj = jnp.dot(enc, wenc_ref[...],
                       preferred_element_type=jnp.float32) + benc_ref[...]  # (L, H)
    dec_proj = jnp.dot(s_t, wdec_ref[...],
                       preferred_element_type=jnp.float32) + bdec_ref[...]  # (1, H)
    feat = jnp.tanh(enc_proj + dec_proj)                                    # (L, H)

    # e_i as a lane-dense (1, L) row on the MXU: (1,H) . (L,H)^T -> (1,L)
    e_row = lax.dot_general(
        we_ref[...], feat,
        dimension_numbers=(((1,), (1,)), ((), ())),
        preferred_element_type=jnp.float32) + be_ref[...]                   # (1, L)

    # softmax over L (lane reduction)
    m = jnp.max(e_row, axis=-1, keepdims=True)
    p = jnp.exp(e_row - m)
    a_row = p / jnp.sum(p, axis=-1, keepdims=True)                          # (1, L)
    at_ref[...] = a_row

    # context_vector = a_t @ encoder_outputs  (MXU, lane-dense)
    context = jnp.dot(a_row, enc, preferred_element_type=jnp.float32)       # (1, 2H)

    # -------------------- vocabulary distribution --------------------
    # a1 = cat(s_t, context) assembled in a VMEM scratch row so first_ll is a
    # single (1,3H)@(3H,H) MXU dot (w1 pre-fused on the host side).
    a1_scratch[:, 0:H] = s_t
    a1_scratch[:, H:3 * H] = context
    a2 = jnp.dot(a1_scratch[...], w1_ref[...],
                 preferred_element_type=jnp.float32) + b1_ref[...]          # (1, H)
    a3 = jnp.dot(a2, w2_ref[...],
                 preferred_element_type=jnp.float32) + b2_ref[...]          # (1, V)
    m3 = jnp.max(a3, axis=-1, keepdims=True)
    e3 = jnp.exp(a3 - m3)
    pvocab_ref[...] = e3 / jnp.sum(e3, axis=-1, keepdims=True)

    # TODO(synk): the p_gen / P_w pointer-generator loop in the PyTorch forward
    # references an undefined `sentence`, iterates a Python dict (idx_pos_map),
    # and its result is never returned -> intentionally not implemented.


def lstm_attn_decoder(embedded, hidden, encoder_outputs, attention_weights,
                      coverage_vec, params):
    """JAX wrapper reproducing LSTMAttnDecoder.forward returned values."""
    h0, c0 = hidden
    B, T, E = embedded.shape
    assert B == 1, "module semantics (torch.mm / broadcasting) imply batch == 1"
    H = params["w_hh"].shape[1]
    V = params["w2"].shape[0]
    enc2d = encoder_outputs.reshape(-1, 2 * H)
    L = enc2d.shape[0]

    ins = (
        embedded.reshape(T, E),
        h0.reshape(1, H),
        c0.reshape(1, H),
        enc2d,
        attention_weights.reshape(1, L),
        coverage_vec.reshape(1, L),
        params["w_ih"].T,                                   # (E, 4H)
        params["w_hh"].T,                                   # (H, 4H)
        (params["b_ih"] + params["b_hh"]).reshape(1, 4 * H),
        params["w_enc"].T,                                  # (2H, H)
        params["b_enc"].reshape(1, H),
        params["w_dec"].T,                                  # (H, H)
        params["b_dec"].reshape(1, H),
        params["w_e"].reshape(1, H),                        # Linear(H,1) weight row
        params["b_e"].reshape(1, 1),
        params["w1"].T,                                     # (3H, H) fused first_ll
        params["b1"].reshape(1, H),
        params["w2"].T,                                     # (H, V)
        params["b2"].reshape(1, V),
    )

    vmem_spec = pl.BlockSpec(memory_space=pltpu.MemorySpace.VMEM)

    out_shapes = (
        jax.ShapeDtypeStruct((1, V), jnp.float32),   # P_vocab
        jax.ShapeDtypeStruct((1, H), jnp.float32),   # h_n
        jax.ShapeDtypeStruct((1, H), jnp.float32),   # c_n
        jax.ShapeDtypeStruct((1, L), jnp.float32),   # a_t (lane-dense row)
        jax.ShapeDtypeStruct((1, L), jnp.float32),   # coverage_vec
    )

    p_vocab, h_n, c_n, a_t, cov_out = pl.pallas_call(
        _decoder_kernel,
        out_shape=out_shapes,
        in_specs=[vmem_spec] * len(ins),
        out_specs=tuple(vmem_spec for _ in out_shapes),
        scratch_shapes=[pltpu.VMEM((1, 3 * H), jnp.float32)],
        compiler_params=pltpu.CompilerParams(vmem_limit_bytes=32 * 1024 * 1024),
    )(*ins)

    hidden_out = (h_n.reshape(1, 1, H), c_n.reshape(1, 1, H))
    return p_vocab, hidden_out, a_t, cov_out


def reference(embedded, hidden, encoder_outputs, attention_weights,
              coverage_vec, params):
    """Pure-JAX port of the PyTorch forward (returned values only)."""
    H = params["w_hh"].shape[1]
    enc = encoder_outputs.reshape(-1, 2 * H)
    coverage = coverage_vec + attention_weights

    h = hidden[0][0]   # (1, H)
    c = hidden[1][0]   # (1, H)
    T = embedded.shape[1]
    b = params["b_ih"] + params["b_hh"]
    for t in range(T):
        x_t = embedded[0, t][None, :]
        gates = x_t @ params["w_ih"].T + h @ params["w_hh"].T + b[None, :]
        i_g = jax.nn.sigmoid(gates[:, 0:H])
        f_g = jax.nn.sigmoid(gates[:, H:2 * H])
        g_g = jnp.tanh(gates[:, 2 * H:3 * H])
        o_g = jax.nn.sigmoid(gates[:, 3 * H:4 * H])
        c = f_g * c + i_g * g_g
        h = o_g * jnp.tanh(c)
    s_t = h

    e_i = (jnp.tanh(enc @ params["w_enc"].T + params["b_enc"]
                    + s_t @ params["w_dec"].T + params["b_dec"])
           @ params["w_e"].T + params["b_e"]).T               # (1, L)
    a_t = jax.nn.softmax(e_i, axis=-1)
    context = a_t @ enc                                       # (1, 2H)
    a1 = jnp.concatenate([s_t, context], axis=1)              # (1, 3H)
    a2 = a1 @ params["w1"].T + params["b1"]
    a3 = a2 @ params["w2"].T + params["b2"]
    p_vocab = jax.nn.softmax(a3, axis=-1)
    return p_vocab, (h[None], c[None]), a_t, coverage


def _init_params(key, E, H, V, L):
    ks = jax.random.split(key, 12)
    s = 0.1
    return {
        "w_ih": s * jax.random.normal(ks[0], (4 * H, E), jnp.float32),
        "w_hh": s * jax.random.normal(ks[1], (4 * H, H), jnp.float32),
        "b_ih": jnp.zeros((4 * H,), jnp.float32),   # init_weight(): constant_(..., 0)
        "b_hh": jnp.zeros((4 * H,), jnp.float32),
        "w_enc": s * jax.random.normal(ks[2], (H, 2 * H), jnp.float32),
        "b_enc": s * jax.random.normal(ks[3], (H,), jnp.float32),
        "w_dec": s * jax.random.normal(ks[4], (H, H), jnp.float32),
        "b_dec": s * jax.random.normal(ks[5], (H,), jnp.float32),
        "w_e": s * jax.random.normal(ks[6], (1, H), jnp.float32),
        "b_e": s * jax.random.normal(ks[7], (1,), jnp.float32),
        "w1": s * jax.random.normal(ks[8], (H, 3 * H), jnp.float32),
        "b1": s * jax.random.normal(ks[9], (H,), jnp.float32),
        "w2": s * jax.random.normal(ks[10], (V, H), jnp.float32),
        "b2": s * jax.random.normal(ks[11], (V,), jnp.float32),
    }


if __name__ == "__main__":
    E, H, V, L, T = 32, 32, 128, 16, 4   # embedding, hidden, vocab, max_sent_len, dec seq

    key = jax.random.PRNGKey(0)
    k_emb, k_h, k_c, k_enc, k_attn, k_cov, k_par = jax.random.split(key, 7)

    embedded = jax.random.normal(k_emb, (1, T, E), jnp.float32)
    h0 = jax.random.normal(k_h, (1, 1, H), jnp.float32)
    c0 = jax.random.normal(k_c, (1, 1, H), jnp.float32)
    encoder_outputs = jax.random.normal(k_enc, (L, 2 * H), jnp.float32)
    attention_weights = jax.nn.softmax(
        jax.random.normal(k_attn, (1, L), jnp.float32), axis=-1)
    coverage_vec = jax.random.uniform(k_cov, (1, L), jnp.float32)
    params = _init_params(k_par, E, H, V, L)

    p_vocab, hidden_out, a_t, cov_out = lstm_attn_decoder(
        embedded, (h0, c0), encoder_outputs, attention_weights,
        coverage_vec, params)
    jax.block_until_ready((p_vocab, hidden_out, a_t, cov_out))

    # correctness check against a pure-JAX reference
    r_pv, (r_h, r_c), r_at, r_cov = reference(
        embedded, (h0, c0), encoder_outputs, attention_weights,
        coverage_vec, params)
    assert jnp.allclose(p_vocab, r_pv, atol=1e-4, rtol=1e-4)
    assert jnp.allclose(hidden_out[0], r_h, atol=1e-4, rtol=1e-4)
    assert jnp.allclose(hidden_out[1], r_c, atol=1e-4, rtol=1e-4)
    assert jnp.allclose(a_t, r_at, atol=1e-4, rtol=1e-4)
    assert jnp.allclose(cov_out, r_cov, atol=1e-4, rtol=1e-4)

    print("KERNEL_OK")
</pallas_src>

<mosaic_0001>
module attributes {stable_mosaic.version = 11 : i64} {
  func.func @_decoder_kernel(%arg0: memref<4x32xf32, #tpu.memory_space<vmem>>, %arg1: memref<1x32xf32, #tpu.memory_space<vmem>>, %arg2: memref<1x32xf32, #tpu.memory_space<vmem>>, %arg3: memref<16x64xf32, #tpu.memory_space<vmem>>, %arg4: memref<1x16xf32, #tpu.memory_space<vmem>>, %arg5: memref<1x16xf32, #tpu.memory_space<vmem>>, %arg6: memref<32x128xf32, #tpu.memory_space<vmem>>, %arg7: memref<32x128xf32, #tpu.memory_space<vmem>>, %arg8: memref<1x128xf32, #tpu.memory_space<vmem>>, %arg9: memref<64x32xf32, #tpu.memory_space<vmem>>, %arg10: memref<1x32xf32, #tpu.memory_space<vmem>>, %arg11: memref<32x32xf32, #tpu.memory_space<vmem>>, %arg12: memref<1x32xf32, #tpu.memory_space<vmem>>, %arg13: memref<1x32xf32, #tpu.memory_space<vmem>>, %arg14: memref<1x1xf32, #tpu.memory_space<vmem>>, %arg15: memref<96x32xf32, #tpu.memory_space<vmem>>, %arg16: memref<1x32xf32, #tpu.memory_space<vmem>>, %arg17: memref<32x128xf32, #tpu.memory_space<vmem>>, %arg18: memref<1x128xf32, #tpu.memory_space<vmem>>, %arg19: memref<1x128xf32, #tpu.memory_space<vmem>>, %arg20: memref<1x32xf32, #tpu.memory_space<vmem>>, %arg21: memref<1x32xf32, #tpu.memory_space<vmem>>, %arg22: memref<1x16xf32, #tpu.memory_space<vmem>>, %arg23: memref<1x16xf32, #tpu.memory_space<vmem>>, %arg24: memref<1x96xf32, #tpu.memory_space<vmem>>) attributes {dimension_semantics = [], scalar_prefetch = 0 : i64, scratch_operands = 1 : i64, tpu.core_type = #tpu.core_type<tc>} {
    %c0 = arith.constant 0 : index
    %c0_0 = arith.constant 0 : index
    %0 = vector.load %arg5[%c0, %c0_0] : memref<1x16xf32, #tpu.memory_space<vmem>>, vector<1x16xf32>
    %c0_1 = arith.constant 0 : index
    %c0_2 = arith.constant 0 : index
    %1 = vector.load %arg4[%c0_1, %c0_2] : memref<1x16xf32, #tpu.memory_space<vmem>>, vector<1x16xf32>
    %2 = arith.addf %0, %1 : vector<1x16xf32>
    %c0_3 = arith.constant 0 : index
    %c0_4 = arith.constant 0 : index
    %3 = vector.load %arg23[%c0_3, %c0_4] : memref<1x16xf32, #tpu.memory_space<vmem>>, vector<1x16xf32>
    tpu.vector_store %arg23[%c0_3, %c0_4], %2 {strides = array<i32>} : memref<1x16xf32, #tpu.memory_space<vmem>>, vector<1x16xf32>,
    %c0_5 = arith.constant 0 : index
    %c0_6 = arith.constant 0 : index
    %4 = vector.load %arg0[%c0_5, %c0_6] : memref<4x32xf32, #tpu.memory_space<vmem>>, vector<4x32xf32>
    %c0_7 = arith.constant 0 : index
    %c0_8 = arith.constant 0 : index
    %5 = vector.load %arg6[%c0_7, %c0_8] : memref<32x128xf32, #tpu.memory_space<vmem>>, vector<32x128xf32>
    %cst = arith.constant dense<0.000000e+00> : vector<4x128xf32>
    %6 = tpu.matmul %4, %5, %cst {dimension_numbers = #tpu.dot_dimension_numbers<[1], [0], [0], [1], [0, 0, 1, 1], [], []>} : vector<4x32xf32>, vector<32x128xf32>, vector<4x128xf32> -> vector<4x128xf32>
    %c0_9 = arith.constant 0 : index
    %c0_10 = arith.constant 0 : index
    %7 = vector.load %arg8[%c0_9, %c0_10] : memref<1x128xf32, #tpu.memory_space<vmem>>, vector<1x128xf32>
    %8 = vector.broadcast %7 : vector<1x128xf32> to vector<4x128xf32>
    %9 = arith.addf %6, %8 : vector<4x128xf32>
    %c0_11 = arith.constant 0 : index
    %c0_12 = arith.constant 0 : index
    %10 = vector.load %arg7[%c0_11, %c0_12] : memref<32x128xf32, #tpu.memory_space<vmem>>, vector<32x128xf32>
    %c0_13 = arith.constant 0 : index
    %c0_14 = arith.constant 0 : index
    %11 = vector.load %arg1[%c0_13, %c0_14] : memref<1x32xf32, #tpu.memory_space<vmem>>, vector<1x32xf32>
    %c0_15 = arith.constant 0 : index
    %c0_16 = arith.constant 0 : index
    %12 = vector.load %arg2[%c0_15, %c0_16] : memref<1x32xf32, #tpu.memory_space<vmem>>, vector<1x32xf32>
    %13 = vector.extract_strided_slice %9 {offsets = [0, 0], sizes = [1, 128], strides = [1, 1]} : vector<4x128xf32> to vector<1x128xf32>
    %cst_17 = arith.constant dense<0.000000e+00> : vector<1x128xf32>
    %14 = tpu.matmul %11, %10, %cst_17 {dimension_numbers = #tpu.dot_dimension_numbers<[1], [0], [0], [1], [0, 0, 1, 1], [], []>} : vector<1x32xf32>, vector<32x128xf32>, vector<1x128xf32> -> vector<1x128xf32>
    %15 = arith.addf %13, %14 : vector<1x128xf32>
    %16 = arith.negf %15 : vector<1x128xf32>
    %17 = math.exp %16 : vector<1x128xf32>
    %cst_18 = arith.constant 1.000000e+00 : f32
    %18 = vector.broadcast %cst_18 : f32 to vector<1x128xf32>
    %19 = arith.addf %18, %17 : vector<1x128xf32>
    %20 = arith.divf %18, %19 : vector<1x128xf32>
    %21 = math.tanh %15 : vector<1x128xf32>
    %22 = vector.extract_strided_slice %20 {offsets = [0, 0], sizes = [1, 32], strides = [1, 1]} : vector<1x128xf32> to vector<1x32xf32>
    %23 = vector.extract_strided_slice %20 {offsets = [0, 32], sizes = [1, 32], strides = [1, 1]} : vector<1x128xf32> to vector<1x32xf32>
    %24 = vector.extract_strided_slice %21 {offsets = [0, 64], sizes = [1, 32], strides = [1, 1]} : vector<1x128xf32> to vector<1x32xf32>
    %25 = vector.extract_strided_slice %20 {offsets = [0, 96], sizes = [1, 32], strides = [1, 1]} : vector<1x128xf32> to vector<1x32xf32>
    %26 = arith.mulf %23, %12 : vector<1x32xf32>
    %27 = arith.mulf %22, %24 : vector<1x32xf32>
    %28 = arith.addf %26, %27 : vector<1x32xf32>
    %29 = math.tanh %28 : vector<1x32xf32>
    %30 = arith.mulf %25, %29 : vector<1x32xf32>
    %31 = vector.extract_strided_slice %9 {offsets = [1, 0], sizes = [1, 128], strides = [1, 1]} : vector<4x128xf32> to vector<1x128xf32>
    %cst_19 = arith.constant dense<0.000000e+00> : vector<1x128xf32>
    %32 = tpu.matmul %30, %10, %cst_19 {dimension_numbers = #tpu.dot_dimension_numbers<[1], [0], [0], [1], [0, 0, 1, 1], [], []>} : vector<1x32xf32>, vector<32x128xf32>, vector<1x128xf32> -> vector<1x128xf32>
    %33 = arith.addf %31, %32 : vector<1x128xf32>
    %34 = arith.negf %33 : vector<1x128xf32>
    %35 = math.exp %34 : vector<1x128xf32>
    %cst_20 = arith.constant 1.000000e+00 : f32
    %36 = vector.broadcast %cst_20 : f32 to vector<1x128xf32>
    %37 = arith.addf %36, %35 : vector<1x128xf32>
    %38 = arith.divf %36, %37 : vector<1x128xf32>
    %39 = math.tanh %33 : vector<1x128xf32>
    %40 = vector.extract_strided_slice %38 {offsets = [0, 0], sizes = [1, 32], strides = [1, 1]} : vector<1x128xf32> to vector<1x32xf32>
    %41 = vector.extract_strided_slice %38 {offsets = [0, 32], sizes = [1, 32], strides = [1, 1]} : vector<1x128xf32> to vector<1x32xf32>
    %42 = vector.extract_strided_slice %39 {offsets = [0, 64], sizes = [1, 32], strides = [1, 1]} : vector<1x128xf32> to vector<1x32xf32>
    %43 = vector.extract_strided_slice %38 {offsets = [0, 96], sizes = [1, 32], strides = [1, 1]} : vector<1x128xf32> to vector<1x32xf32>
    %44 = arith.mulf %41, %28 : vector<1x32xf32>
    %45 = arith.mulf %40, %42 : vector<1x32xf32>
    %46 = arith.addf %44, %45 : vector<1x32xf32>
    %47 = math.tanh %46 : vector<1x32xf32>
    %48 = arith.mulf %43, %47 : vector<1x32xf32>
    %49 = vector.extract_strided_slice %9 {offsets = [2, 0], sizes = [1, 128], strides = [1, 1]} : vector<4x128xf32> to vector<1x128xf32>
    %cst_21 = arith.constant dense<0.000000e+00> : vector<1x128xf32>
    %50 = tpu.matmul %48, %10, %cst_21 {dimension_numbers = #tpu.dot_dimension_numbers<[1], [0], [0], [1], [0, 0, 1, 1], [], []>} : vector<1x32xf32>, vector<32x128xf32>, vector<1x128xf32> -> vector<1x128xf32>
    %51 = arith.addf %49, %50 : vector<1x128xf32>
    %52 = arith.negf %51 : vector<1x128xf32>
    %53 = math.exp %52 : vector<1x128xf32>
    %cst_22 = arith.constant 1.000000e+00 : f32
    %54 = vector.broadcast %cst_22 : f32 to vector<1x128xf32>
    %55 = arith.addf %54, %53 : vector<1x128xf32>
    %56 = arith.divf %54, %55 : vector<1x128xf32>
    %57 = math.tanh %51 : vector<1x128xf32>
    %58 = vector.extract_strided_slice %56 {offsets = [0, 0], sizes = [1, 32], strides = [1, 1]} : vector<1x128xf32> to vector<1x32xf32>
    %59 = vector.extract_strided_slice %56 {offsets = [0, 32], sizes = [1, 32], strides = [1, 1]} : vector<1x128xf32> to vector<1x32xf32>
    %60 = vector.extract_strided_slice %57 {offsets = [0, 64], sizes = [1, 32], strides = [1, 1]} : vector<1x128xf32> to vector<1x32xf32>
    %61 = vector.extract_strided_slice %56 {offsets = [0, 96], sizes = [1, 32], strides = [1, 1]} : vector<1x128xf32> to vector<1x32xf32>
    %62 = arith.mulf %59, %46 : vector<1x32xf32>
    %63 = arith.mulf %58, %60 : vector<1x32xf32>
    %64 = arith.addf %62, %63 : vector<1x32xf32>
    %65 = math.tanh %64 : vector<1x32xf32>
    %66 = arith.mulf %61, %65 : vector<1x32xf32>
    %67 = vector.extract_strided_slice %9 {offsets = [3, 0], sizes = [1, 128], strides = [1, 1]} : vector<4x128xf32> to vector<1x128xf32>
    %cst_23 = arith.constant dense<0.000000e+00> : vector<1x128xf32>
    %68 = tpu.matmul %66, %10, %cst_23 {dimension_numbers = #tpu.dot_dimension_numbers<[1], [0], [0], [1], [0, 0, 1, 1], [], []>} : vector<1x32xf32>, vector<32x128xf32>, vector<1x128xf32> -> vector<1x128xf32>
    %69 = arith.addf %67, %68 : vector<1x128xf32>
    %70 = arith.negf %69 : vector<1x128xf32>
    %71 = math.exp %70 : vector<1x128xf32>
    %cst_24 = arith.constant 1.000000e+00 : f32
    %72 = vector.broadcast %cst_24 : f32 to vector<1x128xf32>
    %73 = arith.addf %72, %71 : vector<1x128xf32>
    %74 = arith.divf %72, %73 : vector<1x128xf32>
    %75 = math.tanh %69 : vector<1x128xf32>
    %76 = vector.extract_strided_slice %74 {offsets = [0, 0], sizes = [1, 32], strides = [1, 1]} : vector<1x128xf32> to vector<1x32xf32>
    %77 = vector.extract_strided_slice %74 {offsets = [0, 32], sizes = [1, 32], strides = [1, 1]} : vector<1x128xf32> to vector<1x32xf32>
    %78 = vector.extract_strided_slice %75 {offsets = [0, 64], sizes = [1, 32], strides = [1, 1]} : vector<1x128xf32> to vector<1x32xf32>
    %79 = vector.extract_strided_slice %74 {offsets = [0, 96], sizes = [1, 32], strides = [1, 1]} : vector<1x128xf32> to vector<1x32xf32>
    %80 = arith.mulf %77, %64 : vector<1x32xf32>
    %81 = arith.mulf %76, %78 : vector<1x32xf32>
    %82 = arith.addf %80, %81 : vector<1x32xf32>
    %83 = math.tanh %82 : vector<1x32xf32>
    %84 = arith.mulf %79, %83 : vector<1x32xf32>
    %c0_25 = arith.constant 0 : index
    %c0_26 = arith.constant 0 : index
    %85 = vector.load %arg20[%c0_25, %c0_26] : memref<1x32xf32, #tpu.memory_space<vmem>>, vector<1x32xf32>
    tpu.vector_store %arg20[%c0_25, %c0_26], %84 {strides = array<i32>} : memref<1x32xf32, #tpu.memory_space<vmem>>, vector<1x32xf32>,
    %c0_27 = arith.constant 0 : index
    %c0_28 = arith.constant 0 : index
    %86 = vector.load %arg21[%c0_27, %c0_28] : memref<1x32xf32, #tpu.memory_space<vmem>>, vector<1x32xf32>
    tpu.vector_store %arg21[%c0_27, %c0_28], %82 {strides = array<i32>} : memref<1x32xf32, #tpu.memory_space<vmem>>, vector<1x32xf32>,
    %c0_29 = arith.constant 0 : index
    %c0_30 = arith.constant 0 : index
    %87 = vector.load %arg3[%c0_29, %c0_30] : memref<16x64xf32, #tpu.memory_space<vmem>>, vector<16x64xf32>
    %c0_31 = arith.constant 0 : index
    %c0_32 = arith.constant 0 : index
    %88 = vector.load %arg9[%c0_31, %c0_32] : memref<64x32xf32, #tpu.memory_space<vmem>>, vector<64x32xf32>
    %cst_33 = arith.constant dense<0.000000e+00> : vector<16x32xf32>
    %89 = tpu.matmul %87, %88, %cst_33 {dimension_numbers = #tpu.dot_dimension_numbers<[1], [0], [0], [1], [0, 0, 1, 1], [], []>} : vector<16x64xf32>, vector<64x32xf32>, vector<16x32xf32> -> vector<16x32xf32>
    %c0_34 = arith.constant 0 : index
    %c0_35 = arith.constant 0 : index
    %90 = vector.load %arg10[%c0_34, %c0_35] : memref<1x32xf32, #tpu.memory_space<vmem>>, vector<1x32xf32>
    %91 = vector.broadcast %90 : vector<1x32xf32> to vector<16x32xf32>
    %92 = arith.addf %89, %91 : vector<16x32xf32>
    %c0_36 = arith.constant 0 : index
    %c0_37 = arith.constant 0 : index
    %93 = vector.load %arg11[%c0_36, %c0_37] : memref<32x32xf32, #tpu.memory_space<vmem>>, vector<32x32xf32>
    %cst_38 = arith.constant dense<0.000000e+00> : vector<1x32xf32>
    %94 = tpu.matmul %84, %93, %cst_38 {dimension_numbers = #tpu.dot_dimension_numbers<[1], [0], [0], [1], [0, 0, 1, 1], [], []>} : vector<1x32xf32>, vector<32x32xf32>, vector<1x32xf32> -> vector<1x32xf32>
    %c0_39 = arith.constant 0 : index
    %c0_40 = arith.constant 0 : index
    %95 = vector.load %arg12[%c0_39, %c0_40] : memref<1x32xf32, #tpu.memory_space<vmem>>, vector<1x32xf32>
    %96 = arith.addf %94, %95 : vector<1x32xf32>
    %97 = vector.broadcast %96 : vector<1x32xf32> to vector<16x32xf32>
    %98 = arith.addf %92, %97 : vector<16x32xf32>
    %99 = math.tanh %98 : vector<16x32xf32>
    %c0_41 = arith.constant 0 : index
    %c0_42 = arith.constant 0 : index
    %100 = vector.load %arg13[%c0_41, %c0_42] : memref<1x32xf32, #tpu.memory_space<vmem>>, vector<1x32xf32>
    %cst_43 = arith.constant dense<0.000000e+00> : vector<1x16xf32>
    %101 = tpu.matmul %100, %99, %cst_43 {dimension_numbers = #tpu.dot_dimension_numbers<[1], [1], [0], [0], [0, 0, 1, 0], [], []>} : vector<1x32xf32>, vector<16x32xf32>, vector<1x16xf32> -> vector<1x16xf32>
    %c0_44 = arith.constant 0 : index
    %c0_45 = arith.constant 0 : index
    %102 = vector.load %arg14[%c0_44, %c0_45] : memref<1x1xf32, #tpu.memory_space<vmem>>, vector<1x1xf32>
    %103 = vector.broadcast %102 : vector<1x1xf32> to vector<1x16xf32>
    %104 = arith.addf %101, %103 : vector<1x16xf32>
    %cst_46 = arith.constant dense<0xFF800000> : vector<1xf32>
    %105 = vector.multi_reduction <maximumf>, %104, %cst_46 [1] : vector<1x16xf32> to vector<1xf32>
    %106 = vector.shape_cast %105 : vector<1xf32> to vector<1x1xf32>
    %107 = vector.broadcast %106 : vector<1x1xf32> to vector<1x16xf32>
    %108 = arith.subf %104, %107 : vector<1x16xf32>
    %109 = math.exp %108 : vector<1x16xf32>
    %cst_47 = arith.constant dense<0.000000e+00> : vector<1xf32>
    %110 = vector.multi_reduction <add>, %109, %cst_47 [1] : vector<1x16xf32> to vector<1xf32>
    %111 = vector.shape_cast %110 : vector<1xf32> to vector<1x1xf32>
    %112 = vector.broadcast %111 : vector<1x1xf32> to vector<1x16xf32>
    %113 = arith.divf %109, %112 : vector<1x16xf32>
    %c0_48 = arith.constant 0 : index
    %c0_49 = arith.constant 0 : index
    %114 = vector.load %arg22[%c0_48, %c0_49] : memref<1x16xf32, #tpu.memory_space<vmem>>, vector<1x16xf32>
    tpu.vector_store %arg22[%c0_48, %c0_49], %113 {strides = array<i32>} : memref<1x16xf32, #tpu.memory_space<vmem>>, vector<1x16xf32>,
    %cst_50 = arith.constant dense<0.000000e+00> : vector<1x64xf32>
    %115 = tpu.matmul %113, %87, %cst_50 {dimension_numbers = #tpu.dot_dimension_numbers<[1], [0], [0], [1], [0, 0, 1, 1], [], []>} : vector<1x16xf32>, vector<16x64xf32>, vector<1x64xf32> -> vector<1x64xf32>
    %c0_51 = arith.constant 0 : index
    %c0_52 = arith.constant 0 : index
    %116 = vector.load %arg24[%c0_51, %c0_52] : memref<1x96xf32, #tpu.memory_space<vmem>>, vector<1x32xf32>
    tpu.vector_store %arg24[%c0_51, %c0_52], %84 {strides = array<i32>} : memref<1x96xf32, #tpu.memory_space<vmem>>, vector<1x32xf32>,
    %c0_53 = arith.constant 0 : index
    %c32 = arith.constant 32 : index
    %117 = vector.load %arg24[%c0_53, %c32] : memref<1x96xf32, #tpu.memory_space<vmem>>, vector<1x64xf32>
    tpu.vector_store %arg24[%c0_53, %c32], %115 {strides = array<i32>} : memref<1x96xf32, #tpu.memory_space<vmem>>, vector<1x64xf32>,
    %c0_54 = arith.constant 0 : index
    %c0_55 = arith.constant 0 : index
    %118 = vector.load %arg24[%c0_54, %c0_55] : memref<1x96xf32, #tpu.memory_space<vmem>>, vector<1x96xf32>
    %c0_56 = arith.constant 0 : index
    %c0_57 = arith.constant 0 : index
    %119 = vector.load %arg15[%c0_56, %c0_57] : memref<96x32xf32, #tpu.memory_space<vmem>>, vector<96x32xf32>
    %cst_58 = arith.constant dense<0.000000e+00> : vector<1x32xf32>
    %120 = tpu.matmul %118, %119, %cst_58 {dimension_numbers = #tpu.dot_dimension_numbers<[1], [0], [0], [1], [0, 0, 1, 1], [], []>} : vector<1x96xf32>, vector<96x32xf32>, vector<1x32xf32> -> vector<1x32xf32>
    %c0_59 = arith.constant 0 : index
    %c0_60 = arith.constant 0 : index
    %121 = vector.load %arg16[%c0_59, %c0_60] : memref<1x32xf32, #tpu.memory_space<vmem>>, vector<1x32xf32>
    %122 = arith.addf %120, %121 : vector<1x32xf32>
    %c0_61 = arith.constant 0 : index
    %c0_62 = arith.constant 0 : index
    %123 = vector.load %arg17[%c0_61, %c0_62] : memref<32x128xf32, #tpu.memory_space<vmem>>, vector<32x128xf32>
    %cst_63 = arith.constant dense<0.000000e+00> : vector<1x128xf32>
    %124 = tpu.matmul %122, %123, %cst_63 {dimension_numbers = #tpu.dot_dimension_numbers<[1], [0], [0], [1], [0, 0, 1, 1], [], []>} : vector<1x32xf32>, vector<32x128xf32>, vector<1x128xf32> -> vector<1x128xf32>
    %c0_64 = arith.constant 0 : index
    %c0_65 = arith.constant 0 : index
    %125 = vector.load %arg18[%c0_64, %c0_65] : memref<1x128xf32, #tpu.memory_space<vmem>>, vector<1x128xf32>
    %126 = arith.addf %124, %125 : vector<1x128xf32>
    %cst_66 = arith.constant dense<0xFF800000> : vector<1xf32>
    %127 = vector.multi_reduction <maximumf>, %126, %cst_66 [1] : vector<1x128xf32> to vector<1xf32>
    %128 = vector.shape_cast %127 : vector<1xf32> to vector<1x1xf32>
    %129 = vector.broadcast %128 : vector<1x1xf32> to vector<1x128xf32>
    %130 = arith.subf %126, %129 : vector<1x128xf32>
    %131 = math.exp %130 : vector<1x128xf32>
    %cst_67 = arith.constant dense<0.000000e+00> : vector<1xf32>
    %132 = vector.multi_reduction <add>, %131, %cst_67 [1] : vector<1x128xf32> to vector<1xf32>
    %133 = vector.shape_cast %132 : vector<1xf32> to vector<1x1xf32>
    %134 = vector.broadcast %133 : vector<1x1xf32> to vector<1x128xf32>
    %135 = arith.divf %131, %134 : vector<1x128xf32>
    %c0_68 = arith.constant 0 : index
    %c0_69 = arith.constant 0 : index
    %136 = vector.load %arg19[%c0_68, %c0_69] : memref<1x128xf32, #tpu.memory_space<vmem>>, vector<1x128xf32>
    tpu.vector_store %arg19[%c0_68, %c0_69], %135 {strides = array<i32>} : memref<1x128xf32, #tpu.memory_space<vmem>>, vector<1x128xf32>,
    return
  }
}

</mosaic_0001>

<llo_original>
// kernel: tpu_custom_call.1
$region0: #{tpu_custom_call.1}
  #allocation0 [shape = 'u32[]', space=smem, size = 0x4, offset = 0x4, fixed_abs, tag = 'smem constant byte address 0x4 - core index']
  #allocation1 [shape = 'u32[144,128]{1,0:T(1,128)}', space=vmem, size = 0x12000, scoped, tag = 'internal scratch']
  #allocation2 [shape = 'f32[1,96]{1,0:T(1,128)}', space=vmem, size = 0x200, scoped, tag = 'scratch operand']
  #allocation3 [shape = 'f32[1,1]{1,0:T(1,128)S(1)}', space=vmem, size = 0x200, scoped, tag = 'scoped memory for tpu_custom_call.1']
  %s0 = inlined_call_operand.vmem [shape: f32[4,32], index: 0, kind: input, shape index: {}]
  %s1 = inlined_call_operand.vmem [shape: f32[1,32], index: 1, kind: input, shape index: {}]
  %s2 = inlined_call_operand.vmem [shape: f32[1,32], index: 2, kind: input, shape index: {}]
  %s3 = inlined_call_operand.vmem [shape: f32[16,64], index: 3, kind: input, shape index: {}]
  %s4 = inlined_call_operand.vmem [shape: f32[1,16], index: 4, kind: input, shape index: {}]
  %s5 = inlined_call_operand.vmem [shape: f32[1,16], index: 5, kind: input, shape index: {}]
  %s6 = inlined_call_operand.vmem [shape: f32[32,128], index: 6, kind: input, shape index: {}]
  %s7 = inlined_call_operand.vmem [shape: f32[32,128], index: 7, kind: input, shape index: {}]
  %s8 = inlined_call_operand.vmem [shape: f32[1,128], index: 8, kind: input, shape index: {}]
  %s9 = inlined_call_operand.vmem [shape: f32[64,32], index: 9, kind: input, shape index: {}]
  %s10 = inlined_call_operand.vmem [shape: f32[1,32], index: 10, kind: input, shape index: {}]
  %s11 = inlined_call_operand.vmem [shape: f32[32,32], index: 11, kind: input, shape index: {}]
  %s12 = inlined_call_operand.vmem [shape: f32[1,32], index: 12, kind: input, shape index: {}]
  %s13 = inlined_call_operand.vmem [shape: f32[1,32], index: 13, kind: input, shape index: {}]
  %s14 = inlined_call_operand.<no memory space> [shape: f32[1,1], index: 14, kind: input, shape index: {}]
  %s15 = inlined_call_operand.vmem [shape: f32[96,32], index: 15, kind: input, shape index: {}]
  %s16 = inlined_call_operand.vmem [shape: f32[1,32], index: 16, kind: input, shape index: {}]
  %s17 = inlined_call_operand.vmem [shape: f32[32,128], index: 17, kind: input, shape index: {}]
  %s18 = inlined_call_operand.vmem [shape: f32[1,128], index: 18, kind: input, shape index: {}]
  %s19 = inlined_call_operand.hbm [shape: f32[1,128], index: 19, kind: output, shape index: {0}]
  %s20 = inlined_call_operand.hbm [shape: f32[1,32], index: 20, kind: output, shape index: {1}]
  %s21 = inlined_call_operand.hbm [shape: f32[1,32], index: 21, kind: output, shape index: {2}]
  %s22 = inlined_call_operand.hbm [shape: f32[1,16], index: 22, kind: output, shape index: {3}]
  %s23 = inlined_call_operand.hbm [shape: f32[1,16], index: 23, kind: output, shape index: {4}]
  %24 = xla_tuple %s19, %s20, %s21, %s22, %s23
  %s25 = sld [smem:[#allocation0]]
  $region118: #{tpu_custom_call.1} parent=0
    _
  %s27 = ssub.s32 1, %s25
  %s28 = scalar_select 0, %s27, %s25
  %v29 = vstv %s14
  %30 = vst [vmem:[#allocation3] sm:$0x1] %v29
  $region1: #{tpu_custom_call.1} parent=0
    #allocation4 [shape = 'u8[512]{0}', space=vmem, size = 0x400, scoped, tag = 'output window, operand 0, single buffered']
    #allocation5 [shape = 's32[1]{0}', space=sflag, size = 0x4, scoped, tag = 'scoped memory for tpu_custom_call.1']
    #allocation6 [shape = 'u8[512]{0}', space=vmem, size = 0x400, scoped, tag = 'output window, operand 1, single buffered']
    #allocation7 [shape = 's32[1]{0}', space=sflag, size = 0x4, scoped, tag = 'scoped memory for tpu_custom_call.1']
    #allocation8 [shape = 'u8[512]{0}', space=vmem, size = 0x400, scoped, tag = 'output window, operand 2, single buffered']
    #allocation9 [shape = 'u8[512]{0}', space=vmem, size = 0x400, scoped, tag = 'output window, operand 3, single buffered']
    #allocation10 [shape = 's32[1]{0}', space=sflag, size = 0x4, scoped, tag = 'scoped memory for tpu_custom_call.1']
    #allocation11 [shape = 'u8[512]{0}', space=vmem, size = 0x400, scoped, tag = 'output window, operand 4, single buffered']
    %31 = vsyncpa [#allocation5], 0
    %32 = vsyncpa [#allocation7], 0
    %33 = vsyncpa [#allocation10], 0
    // Predicated region
    $region2: #{tpu_custom_call.1} parent=1 // pred_check
      _
    $region3: #{tpu_custom_call.1} parent=1 // pred_check_branch
      %35 = sbr.rel (0) target = $region5
    $region4: #{tpu_custom_call.1} parent=1 // pred_region
      _
    $region5: #{tpu_custom_call.1} parent=1 // pred_fallthru
      _
    // Predicated region
    $region6: #{tpu_custom_call.1} parent=1 // pred_check
      _
    $region7: #{tpu_custom_call.1} parent=1 // pred_check_branch
      %37 = sbr.rel (0) target = $region9
    $region8: #{tpu_custom_call.1} parent=1 // pred_region
      _
    $region9: #{tpu_custom_call.1} parent=1 // pred_fallthru
      _
    // Predicated region
    $region10: #{tpu_custom_call.1} parent=1 // pred_check
      _
    $region11: #{tpu_custom_call.1} parent=1 // pred_check_branch
      %39 = sbr.rel (0) target = $region13
    $region12: #{tpu_custom_call.1} parent=1 // pred_region
      _
    $region13: #{tpu_custom_call.1} parent=1 // pred_fallthru
      _
    // Predicated region
    $region14: #{tpu_custom_call.1} parent=1 // pred_check
      _
    $region15: #{tpu_custom_call.1} parent=1 // pred_check_branch
      %41 = sbr.rel (0) target = $region17
    $region16: #{tpu_custom_call.1} parent=1 // pred_region
      _
    $region17: #{tpu_custom_call.1} parent=1 // pred_fallthru
      _
    // Predicated region
    $region18: #{tpu_custom_call.1} parent=1 // pred_check
      _
    $region19: #{tpu_custom_call.1} parent=1 // pred_check_branch
      %43 = sbr.rel (0) target = $region21
    $region20: #{tpu_custom_call.1} parent=1 // pred_region
      _
    $region21: #{tpu_custom_call.1} parent=1 // pred_fallthru
      _
    // Predicated region
    $region22: #{tpu_custom_call.1} parent=1 // pred_check
      _
    $region23: #{tpu_custom_call.1} parent=1 // pred_check_branch
      %45 = sbr.rel (0) target = $region25
    $region24: #{tpu_custom_call.1} parent=1 // pred_region
      _
    $region25: #{tpu_custom_call.1} parent=1 // pred_fallthru
      _
    // Predicated region
    $region26: #{tpu_custom_call.1} parent=1 // pred_check
      _
    $region27: #{tpu_custom_call.1} parent=1 // pred_check_branch
      %47 = sbr.rel (0) target = $region29
    $region28: #{tpu_custom_call.1} parent=1 // pred_region
      _
    $region29: #{tpu_custom_call.1} parent=1 // pred_fallthru
      _
    // Predicated region
    $region30: #{tpu_custom_call.1} parent=1 // pred_check
      _
    $region31: #{tpu_custom_call.1} parent=1 // pred_check_branch
      %49 = sbr.rel (0) target = $region33
    $region32: #{tpu_custom_call.1} parent=1 // pred_region
      _
    $region33: #{tpu_custom_call.1} parent=1 // pred_fallthru
      _
    // Predicated region
    $region34: #{tpu_custom_call.1} parent=1 // pred_check
      _
    $region35: #{tpu_custom_call.1} parent=1 // pred_check_branch
      %51 = sbr.rel (0) target = $region37
    $region36: #{tpu_custom_call.1} parent=1 // pred_region
      _
    $region37: #{tpu_custom_call.1} parent=1 // pred_fallthru
      _
    // Predicated region
    $region38: #{tpu_custom_call.1} parent=1 // pred_check
      _
    $region39: #{tpu_custom_call.1} parent=1 // pred_check_branch
      %53 = sbr.rel (0) target = $region41
    $region40: #{tpu_custom_call.1} parent=1 // pred_region
      _
    $region41: #{tpu_custom_call.1} parent=1 // pred_fallthru
      _
    // Predicated region
    $region42: #{tpu_custom_call.1} parent=1 // pred_check
      _
    $region43: #{tpu_custom_call.1} parent=1 // pred_check_branch
      %55 = sbr.rel (0) target = $region45
    $region44: #{tpu_custom_call.1} parent=1 // pred_region
      _
    $region45: #{tpu_custom_call.1} parent=1 // pred_fallthru
      _
    // Predicated region
    $region46: #{tpu_custom_call.1} parent=1 // pred_check
      _
    $region47: #{tpu_custom_call.1} parent=1 // pred_check_branch
      %57 = sbr.rel (0) target = $region49
    $region48: #{tpu_custom_call.1} parent=1 // pred_region
      _
    $region49: #{tpu_custom_call.1} parent=1 // pred_fallthru
      _
    // Predicated region
    $region50: #{tpu_custom_call.1} parent=1 // pred_check
      _
    $region51: #{tpu_custom_call.1} parent=1 // pred_check_branch
      %59 = sbr.rel (0) target = $region53
    $region52: #{tpu_custom_call.1} parent=1 // pred_region
      _
    $region53: #{tpu_custom_call.1} parent=1 // pred_fallthru
      _
    // Predicated region
    $region54: #{tpu_custom_call.1} parent=1 // pred_check
      _
    $region55: #{tpu_custom_call.1} parent=1 // pred_check_branch
      %61 = sbr.rel (0) target = $region57
    $region56: #{tpu_custom_call.1} parent=1 // pred_region
      _
    $region57: #{tpu_custom_call.1} parent=1 // pred_fallthru
      _
    // Predicated region
    $region58: #{tpu_custom_call.1} parent=1 // pred_check
      _
    $region59: #{tpu_custom_call.1} parent=1 // pred_check_branch
      %63 = sbr.rel (0) target = $region61
    $region60: #{tpu_custom_call.1} parent=1 // pred_region
      _
    $region61: #{tpu_custom_call.1} parent=1 // pred_fallthru
      _
    // Predicated region
    $region62: #{tpu_custom_call.1} parent=1 // pred_check
      _
    $region63: #{tpu_custom_call.1} parent=1 // pred_check_branch
      %65 = sbr.rel (0) target = $region65
    $region64: #{tpu_custom_call.1} parent=1 // pred_region
      _
    $region65: #{tpu_custom_call.1} parent=1 // pred_fallthru
      _
    // Predicated region
    $region66: #{tpu_custom_call.1} parent=1 // pred_check
      _
    $region67: #{tpu_custom_call.1} parent=1 // pred_check_branch
      %67 = sbr.rel (0) target = $region69
    $region68: #{tpu_custom_call.1} parent=1 // pred_region
      _
    $region69: #{tpu_custom_call.1} parent=1 // pred_fallthru
      _
    // Predicated region
    $region70: #{tpu_custom_call.1} parent=1 // pred_check
      _
    $region71: #{tpu_custom_call.1} parent=1 // pred_check_branch
      %69 = sbr.rel (0) target = $region73
    $region72: #{tpu_custom_call.1} parent=1 // pred_region
      _
    $region73: #{tpu_custom_call.1} parent=1 // pred_fallthru
      _
    // Predicated region
    $region74: #{tpu_custom_call.1} parent=1 // pred_check
      _
    $region75: #{tpu_custom_call.1} parent=1 // pred_check_branch
      %71 = sbr.rel (0) target = $region77
    $region76: #{tpu_custom_call.1} parent=1 // pred_region
      _
    $region77: #{tpu_custom_call.1} parent=1 // pred_fallthru
      _
    %v72 = vld [vmem:[%s5] sm:$0x1]
    %v73 = vld [vmem:[%s4] sm:$0x1]
    %v74 = vadd.f32 %v72, %v73
    %vm75 = vcmask 122880
    %76 = vst.msk [vmem:[#allocation11] sm:$0x1] %vm75, %v74
    %v77 = vld [vmem:[%s0] sm:$0xf]
    %v78 = vld [vmem:[%s6] sm:$0xff]
    %v79 = vld [vmem:[%s6 + $0x8] sm:$0xff]
    %v80 = vld [vmem:[%s6 + $0x10] sm:$0xff]
    %v81 = vld [vmem:[%s6 + $0x18] sm:$0xff]
    %v82 = vld [vmem:[%s8] sm:$0x1]
    %v84 = vlaneseq
    %v85 = vshrl.u32 %v84, 7
    %v86 = vsub.s32 0, %v85
    %v87 = vrot.slane %v82, %v86
    %vm89 = vcmask 261120
    %v91 = vsel %vm89, %v77, 0
    %93 = vmatprep.subr.mxu0 0.0
    %94 = vmatpush1.msra.mxu0 0.0
    %95 = vmatprep.subr.mxu0 0.0
    %96 = vmatpush1.msra.mxu0 0.0
    %97 = vmatprep.subr.mxu0 0.0
    %98 = vmatpush1.msra.mxu0 0.0
    %99 = vmatprep.subr.mxu0 0.0
    %100 = vmatpush1.msra.mxu0 0.0
    %101 = vmatprep.subr.mxu0 0.0
    %102 = vmatpush1.msra.mxu0 0.0
    %103 = vmatprep.subr.mxu0 0.0
    %104 = vmatpush1.msra.mxu0 0.0
    %105 = vmatprep.subr.mxu0 0.0
    %106 = vmatpush1.msra.mxu0 0.0
    %107 = vmatprep.subr.mxu0 0.0
    %108 = vmatpush1.msra.mxu0 0.0
    %109 = vmatprep.subr.mxu0 0.0
    %110 = vmatpush1.msra.mxu0 0.0
    %111 = vmatprep.subr.mxu0 0.0
    %112 = vmatpush1.msra.mxu0 0.0
    %113 = vmatprep.subr.mxu0 0.0
    %114 = vmatpush1.msra.mxu0 0.0
    %115 = vmatprep.subr.mxu0 0.0
    %116 = vmatpush1.msra.mxu0 0.0
    %117 = vmatprep.subr.mxu0 0.0
    %118 = vmatpush1.msra.mxu0 %v81
    %119 = vmatprep.subr.mxu0 0.0
    %120 = vmatpush1.msra.mxu0 %v80
    %121 = vmatprep.subr.mxu0 0.0
    %122 = vmatpush1.msra.mxu0 %v79
    %123 = vmatprep.subr.mxu0 0.0
    %124 = vmatpush1.msra.mxu0 %v78
    %125 = vmatprep.subr.mxu0 0.0
    %126 = vmatpush2.msra.mxu0 0.0
    %127 = vmatprep.subr.mxu0 0.0
    %128 = vmatpush2.msra.mxu0 0.0
    %129 = vmatprep.subr.mxu0 0.0
    %130 = vmatpush2.msra.mxu0 0.0
    %131 = vmatprep.subr.mxu0 0.0
    %132 = vmatpush2.msra.mxu0 0.0
    %133 = vmatprep.subr.mxu0 0.0
    %134 = vmatpush2.msra.mxu0 0.0
    %135 = vmatprep.subr.mxu0 0.0
    %136 = vmatpush2.msra.mxu0 0.0
    %137 = vmatprep.subr.mxu0 0.0
    %138 = vmatpush2.msra.mxu0 0.0
    %139 = vmatprep.subr.mxu0 0.0
    %140 = vmatpush2.msra.mxu0 0.0
    %141 = vmatprep.subr.mxu0 0.0
    %142 = vmatpush2.msra.mxu0 0.0
    %143 = vmatprep.subr.mxu0 0.0
    %144 = vmatpush2.msra.mxu0 0.0
    %145 = vmatprep.subr.mxu0 0.0
    %146 = vmatpush2.msra.mxu0 0.0
    %147 = vmatprep.subr.mxu0 0.0
    %148 = vmatpush2.msra.mxu0 0.0
    %149 = vmatprep.subr.mxu0 0.0
    %150 = vmatpush2.msra.mxu0 0.0
    %151 = vmatprep.subr.mxu0 0.0
    %152 = vmatpush2.msra.mxu0 0.0
    %153 = vmatprep.subr.mxu0 0.0
    %154 = vmatpush2.msra.mxu0 0.0
    %155 = vmatprep.subr.mxu0 0.0
    %156 = vmatpush2.msra.mxu0 0.0
    %157 = vmatprep.mubr.f32.mxu0 0.0
    %158 = vmatmul.mubr.f32.gmra.mxu0 %v91
    %v159 = vpop.f32.mrf.mxu0
    %v160 = vadd.f32 %v87, %v159
    %v161 = vpop.f32.mrf.mxu0
    %162 = vdwg.mxu0
    %v163 = vld [vmem:[%s7] sm:$0xff]
    %v164 = vld [vmem:[%s7 + $0x8] sm:$0xff]
    %v165 = vld [vmem:[%s7 + $0x10] sm:$0xff]
    %v166 = vld [vmem:[%s7 + $0x18] sm:$0xff]
    %v167 = vld [vmem:[%s1] sm:$0x1]
    %v168 = vld [vmem:[%s2] sm:$0x1]
    %v170 = vsel %vm89, %v167, 0
    %172 = vmatprep.subr.mxu0 0.0
    %173 = vmatpush1.msra.mxu0 0.0
    %174 = vmatprep.subr.mxu0 0.0
    %175 = vmatpush1.msra.mxu0 0.0
    %176 = vmatprep.subr.mxu0 0.0
    %177 = vmatpush1.msra.mxu0 0.0
    %178 = vmatprep.subr.mxu0 0.0
    %179 = vmatpush1.msra.mxu0 0.0
    %180 = vmatprep.subr.mxu0 0.0
    %181 = vmatpush1.msra.mxu0 0.0
    %182 = vmatprep.subr.mxu0 0.0
    %183 = vmatpush1.msra.mxu0 0.0
    %184 = vmatprep.subr.mxu0 0.0
    %185 = vmatpush1.msra.mxu0 0.0
    %186 = vmatprep.subr.mxu0 0.0
    %187 = vmatpush1.msra.mxu0 0.0
    %188 = vmatprep.subr.mxu0 0.0
    %189 = vmatpush1.msra.mxu0 0.0
    %190 = vmatprep.subr.mxu0 0.0
    %191 = vmatpush1.msra.mxu0 0.0
    %192 = vmatprep.subr.mxu0 0.0
    %193 = vmatpush1.msra.mxu0 0.0
    %194 = vmatprep.subr.mxu0 0.0
    %195 = vmatpush1.msra.mxu0 0.0
    %196 = vmatprep.subr.mxu0 0.0
    %197 = vmatpush1.msra.mxu0 %v166
    %198 = vmatprep.subr.mxu0 0.0
    %199 = vmatpush1.msra.mxu0 %v165
    %200 = vmatprep.subr.mxu0 0.0
    %201 = vmatpush1.msra.mxu0 %v164
    %202 = vmatprep.subr.mxu0 0.0
    %203 = vmatpush1.msra.mxu0 %v163
    %204 = vmatprep.subr.mxu0 0.0
    %205 = vmatpush2.msra.mxu0 0.0
    %206 = vmatprep.subr.mxu0 0.0
    %207 = vmatpush2.msra.mxu0 0.0
    %208 = vmatprep.subr.mxu0 0.0
    %209 = vmatpush2.msra.mxu0 0.0
    %210 = vmatprep.subr.mxu0 0.0
    %211 = vmatpush2.msra.mxu0 0.0
    %212 = vmatprep.subr.mxu0 0.0
    %213 = vmatpush2.msra.mxu0 0.0
    %214 = vmatprep.subr.mxu0 0.0
    %215 = vmatpush2.msra.mxu0 0.0
    %216 = vmatprep.subr.mxu0 0.0
    %217 = vmatpush2.msra.mxu0 0.0
    %218 = vmatprep.subr.mxu0 0.0
    %219 = vmatpush2.msra.mxu0 0.0
    %220 = vmatprep.subr.mxu0 0.0
    %221 = vmatpush2.msra.mxu0 0.0
    %222 = vmatprep.subr.mxu0 0.0
    %223 = vmatpush2.msra.mxu0 0.0
    %224 = vmatprep.subr.mxu0 0.0
    %225 = vmatpush2.msra.mxu0 0.0
    %226 = vmatprep.subr.mxu0 0.0
    %227 = vmatpush2.msra.mxu0 0.0
    %228 = vmatprep.subr.mxu0 0.0
    %229 = vmatpush2.msra.mxu0 0.0
    %230 = vmatprep.subr.mxu0 0.0
    %231 = vmatpush2.msra.mxu0 0.0
    %232 = vmatprep.subr.mxu0 0.0
    %233 = vmatpush2.msra.mxu0 0.0
    %234 = vmatprep.subr.mxu0 0.0
    %235 = vmatpush2.msra.mxu0 0.0
    %236 = vmatprep.mubr.f32.mxu0 0.0
    %237 = vmatmul.mubr.f32.gmra.mxu0 %v170
    %v238 = vpop.f32.mrf.mxu0
    %v239 = vadd.f32 0.0, %v238
    %v240 = vpop.f32.mrf.mxu0
    %241 = vdwg.mxu0
    %v242 = vadd.f32 %v160, %v239
    %v243 = vxor.u32 %v242, 2147483648
    %v244 = vmul.f32 %v243, 1.442695
    %v245 = vpow.pop %v244
    %v246 = vadd.f32 %v245, 1.0
    %v247 = vrcp.pop %v246
    %v248 = vmul.f32 1.0, %v247
    %v249 = vtanh.pop %v242
    %v251 = vlaneseq
    %v252 = vshrl.u32 %v251, 7
    %v253 = vsub.s32 0, %v252
    %v254 = vrot.slane %v168, %v253
    %255 = vrot.lane.b32.xlu0 %v254, 32
    %v256 = vpop.permute.xlu0 %255
    %v258 = vmul.f32 %v248, %v256
    %260 = vrot.lane.b32.xlu0 %v249, 64
    %v261 = vpop.permute.xlu0 %260
    %v263 = vmul.f32 %v248, %v261
    %265 = vrot.lane.b32.xlu0 %v263, 32
    %v266 = vpop.permute.xlu0 %265
    %v268 = vadd.f32 %v258, %v266
    %v269 = vtanh.pop %v268
    %271 = vrot.lane.b32.xlu0 %v269, 64
    %v272 = vpop.permute.xlu0 %271
    %v274 = vmul.f32 %v248, %v272
    %276 = vrot.lane.b32.xlu0 %v274, 32
    %v277 = vpop.permute.xlu0 %276
    %v278 = vsel %vm89, %v277, 0
    %280 = vmatprep.subr.mxu0 0.0
    %281 = vmatpush1.msra.mxu0 0.0
    %282 = vmatprep.subr.mxu0 0.0
    %283 = vmatpush1.msra.mxu0 0.0
    %284 = vmatprep.subr.mxu0 0.0
    %285 = vmatpush1.msra.mxu0 0.0
    %286 = vmatprep.subr.mxu0 0.0
    %287 = vmatpush1.msra.mxu0 0.0
    %288 = vmatprep.subr.mxu0 0.0
    %289 = vmatpush1.msra.mxu0 0.0
    %290 = vmatprep.subr.mxu0 0.0
    %291 = vmatpush1.msra.mxu0 0.0
    %292 = vmatprep.subr.mxu0 0.0
    %293 = vmatpush1.msra.mxu0 0.0
    %294 = vmatprep.subr.mxu0 0.0
    %295 = vmatpush1.msra.mxu0 0.0
    %296 = vmatprep.subr.mxu0 0.0
    %297 = vmatpush1.msra.mxu0 0.0
    %298 = vmatprep.subr.mxu0 0.0
    %299 = vmatpush1.msra.mxu0 0.0
    %300 = vmatprep.subr.mxu0 0.0
    %301 = vmatpush1.msra.mxu0 0.0
    %302 = vmatprep.subr.mxu0 0.0
    %303 = vmatpush1.msra.mxu0 0.0
    %304 = vmatprep.subr.mxu0 0.0
    %305 = vmatpush1.msra.mxu0 %v166
    %306 = vmatprep.subr.mxu0 0.0
    %307 = vmatpush1.msra.mxu0 %v165
    %308 = vmatprep.subr.mxu0 0.0
    %309 = vmatpush1.msra.mxu0 %v164
    %310 = vmatprep.subr.mxu0 0.0
    %311 = vmatpush1.msra.mxu0 %v163
    %312 = vmatprep.subr.mxu0 0.0
    %313 = vmatpush2.msra.mxu0 0.0
    %314 = vmatprep.subr.mxu0 0.0
    %315 = vmatpush2.msra.mxu0 0.0
    %316 = vmatprep.subr.mxu0 0.0
    %317 = vmatpush2.msra.mxu0 0.0
    %318 = vmatprep.subr.mxu0 0.0
    %319 = vmatpush2.msra.mxu0 0.0
    %320 = vmatprep.subr.mxu0 0.0
    %321 = vmatpush2.msra.mxu0 0.0
    %322 = vmatprep.subr.mxu0 0.0
    %323 = vmatpush2.msra.mxu0 0.0
    %324 = vmatprep.subr.mxu0 0.0
    %325 = vmatpush2.msra.mxu0 0.0
    %326 = vmatprep.subr.mxu0 0.0
    %327 = vmatpush2.msra.mxu0 0.0
    %328 = vmatprep.subr.mxu0 0.0
    %329 = vmatpush2.msra.mxu0 0.0
    %330 = vmatprep.subr.mxu0 0.0
    %331 = vmatpush2.msra.mxu0 0.0
    %332 = vmatprep.subr.mxu0 0.0
    %333 = vmatpush2.msra.mxu0 0.0
    %334 = vmatprep.subr.mxu0 0.0
    %335 = vmatpush2.msra.mxu0 0.0
    %336 = vmatprep.subr.mxu0 0.0
    %337 = vmatpush2.msra.mxu0 0.0
    %338 = vmatprep.subr.mxu0 0.0
    %339 = vmatpush2.msra.mxu0 0.0
    %340 = vmatprep.subr.mxu0 0.0
    %341 = vmatpush2.msra.mxu0 0.0
    %342 = vmatprep.subr.mxu0 0.0
    %343 = vmatpush2.msra.mxu0 0.0
    %344 = vmatprep.mubr.f32.mxu0 0.0
    %345 = vmatmul.mubr.f32.gmra.mxu0 %v278
    %v346 = vpop.f32.mrf.mxu0
    %v347 = vadd.f32 0.0, %v346
    %v348 = vpop.f32.mrf.mxu0
    %349 = vdwg.mxu0
    %v351 = vrot.slane %v347, 7
    %v353 = vadd.f32 %v160, %v351
    %v354 = vxor.u32 %v353, 2147483648
    %v355 = vmul.f32 %v354, 1.442695
    %v356 = vpow.pop %v355
    %v357 = vadd.f32 %v356, 1.0
    %v358 = vrcp.pop %v357
    %v359 = vmul.f32 1.0, %v358
    %v360 = vtanh.pop %v353
    %v362 = vrot.slane %v268, 7
    %v364 = vmul.f32 %v359, %v362
    %366 = vrot.lane.b32.xlu0 %v360, 64
    %v367 = vpop.permute.xlu0 %366
    %v369 = vmul.f32 %v359, %v367
    %371 = vrot.lane.b32.xlu0 %v369, 32
    %v372 = vpop.permute.xlu0 %371
    %v374 = vadd.f32 %v364, %v372
    %v375 = vtanh.pop %v374
    %377 = vrot.lane.b32.xlu0 %v375, 64
    %v378 = vpop.permute.xlu0 %377
    %v380 = vmul.f32 %v359, %v378
    %v382 = vrot.slane %v380, 1
    %383 = vrot.lane.b32.xlu0 %v382, 32
    %v384 = vpop.permute.xlu0 %383
    %v385 = vsel %vm89, %v384, 0
    %387 = vmatprep.subr.mxu0 0.0
    %388 = vmatpush1.msra.mxu0 0.0
    %389 = vmatprep.subr.mxu0 0.0
    %390 = vmatpush1.msra.mxu0 0.0
    %391 = vmatprep.subr.mxu0 0.0
    %392 = vmatpush1.msra.mxu0 0.0
    %393 = vmatprep.subr.mxu0 0.0
    %394 = vmatpush1.msra.mxu0 0.0
    %395 = vmatprep.subr.mxu0 0.0
    %396 = vmatpush1.msra.mxu0 0.0
    %397 = vmatprep.subr.mxu0 0.0
    %398 = vmatpush1.msra.mxu0 0.0
    %399 = vmatprep.subr.mxu0 0.0
    %400 = vmatpush1.msra.mxu0 0.0
    %401 = vmatprep.subr.mxu0 0.0
    %402 = vmatpush1.msra.mxu0 0.0
    %403 = vmatprep.subr.mxu0 0.0
    %404 = vmatpush1.msra.mxu0 0.0
    %405 = vmatprep.subr.mxu0 0.0
    %406 = vmatpush1.msra.mxu0 0.0
    %407 = vmatprep.subr.mxu0 0.0
    %408 = vmatpush1.msra.mxu0 0.0
    %409 = vmatprep.subr.mxu0 0.0
    %410 = vmatpush1.msra.mxu0 0.0
    %411 = vmatprep.subr.mxu0 0.0
    %412 = vmatpush1.msra.mxu0 %v166
    %413 = vmatprep.subr.mxu0 0.0
    %414 = vmatpush1.msra.mxu0 %v165
    %415 = vmatprep.subr.mxu0 0.0
    %416 = vmatpush1.msra.mxu0 %v164
    %417 = vmatprep.subr.mxu0 0.0
    %418 = vmatpush1.msra.mxu0 %v163
    %419 = vmatprep.subr.mxu0 0.0
    %420 = vmatpush2.msra.mxu0 0.0
    %421 = vmatprep.subr.mxu0 0.0
    %422 = vmatpush2.msra.mxu0 0.0
    %423 = vmatprep.subr.mxu0 0.0
    %424 = vmatpush2.msra.mxu0 0.0
    %425 = vmatprep.subr.mxu0 0.0
    %426 = vmatpush2.msra.mxu0 0.0
    %427 = vmatprep.subr.mxu0 0.0
    %428 = vmatpush2.msra.mxu0 0.0
    %429 = vmatprep.subr.mxu0 0.0
    %430 = vmatpush2.msra.mxu0 0.0
    %431 = vmatprep.subr.mxu0 0.0
    %432 = vmatpush2.msra.mxu0 0.0
    %433 = vmatprep.subr.mxu0 0.0
    %434 = vmatpush2.msra.mxu0 0.0
    %435 = vmatprep.subr.mxu0 0.0
    %436 = vmatpush2.msra.mxu0 0.0
    %437 = vmatprep.subr.mxu0 0.0
    %438 = vmatpush2.msra.mxu0 0.0
    %439 = vmatprep.subr.mxu0 0.0
    %440 = vmatpush2.msra.mxu0 0.0
    %441 = vmatprep.subr.mxu0 0.0
    %442 = vmatpush2.msra.mxu0 0.0
    %443 = vmatprep.subr.mxu0 0.0
    %444 = vmatpush2.msra.mxu0 0.0
    %445 = vmatprep.subr.mxu0 0.0
    %446 = vmatpush2.msra.mxu0 0.0
    %447 = vmatprep.subr.mxu0 0.0
    %448 = vmatpush2.msra.mxu0 0.0
    %449 = vmatprep.subr.mxu0 0.0
    %450 = vmatpush2.msra.mxu0 0.0
    %451 = vmatprep.mubr.f32.mxu0 0.0
    %452 = vmatmul.mubr.f32.gmra.mxu0 %v385
    %v453 = vpop.f32.mrf.mxu0
    %v454 = vadd.f32 0.0, %v453
    %v455 = vpop.f32.mrf.mxu0
    %456 = vdwg.mxu0
    %v458 = vrot.slane %v454, 6
    %v460 = vadd.f32 %v160, %v458
    %v461 = vxor.u32 %v460, 2147483648
    %v462 = vmul.f32 %v461, 1.442695
    %v463 = vpow.pop %v462
    %v464 = vadd.f32 %v463, 1.0
    %v465 = vrcp.pop %v464
    %v466 = vmul.f32 1.0, %v465
    %v467 = vtanh.pop %v460
    %v469 = vrot.slane %v374, 7
    %v471 = vmul.f32 %v466, %v469
    %473 = vrot.lane.b32.xlu0 %v467, 64
    %v474 = vpop.permute.xlu0 %473
    %v476 = vmul.f32 %v466, %v474
    %478 = vrot.lane.b32.xlu0 %v476, 32
    %v479 = vpop.permute.xlu0 %478
    %v481 = vadd.f32 %v471, %v479
    %v482 = vtanh.pop %v481
    %484 = vrot.lane.b32.xlu0 %v482, 64
    %v485 = vpop.permute.xlu0 %484
    %v487 = vmul.f32 %v466, %v485
    %v489 = vrot.slane %v487, 2
    %490 = vrot.lane.b32.xlu0 %v489, 32
    %v491 = vpop.permute.xlu0 %490
    %v492 = vsel %vm89, %v491, 0
    %494 = vmatprep.subr.mxu0 0.0
    %495 = vmatpush1.msra.mxu0 0.0
    %496 = vmatprep.subr.mxu0 0.0
    %497 = vmatpush1.msra.mxu0 0.0
    %498 = vmatprep.subr.mxu0 0.0
    %499 = vmatpush1.msra.mxu0 0.0
    %500 = vmatprep.subr.mxu0 0.0
    %501 = vmatpush1.msra.mxu0 0.0
    %502 = vmatprep.subr.mxu0 0.0
    %503 = vmatpush1.msra.mxu0 0.0
    %504 = vmatprep.subr.mxu0 0.0
    %505 = vmatpush1.msra.mxu0 0.0
    %506 = vmatprep.subr.mxu0 0.0
    %507 = vmatpush1.msra.mxu0 0.0
    %508 = vmatprep.subr.mxu0 0.0
    %509 = vmatpush1.msra.mxu0 0.0
    %510 = vmatprep.subr.mxu0 0.0
    %511 = vmatpush1.msra.mxu0 0.0
    %512 = vmatprep.subr.mxu0 0.0
    %513 = vmatpush1.msra.mxu0 0.0
    %514 = vmatprep.subr.mxu0 0.0
    %515 = vmatpush1.msra.mxu0 0.0
    %516 = vmatprep.subr.mxu0 0.0
    %517 = vmatpush1.msra.mxu0 0.0
    %518 = vmatprep.subr.mxu0 0.0
    %519 = vmatpush1.msra.mxu0 %v166
    %520 = vmatprep.subr.mxu0 0.0
    %521 = vmatpush1.msra.mxu0 %v165
    %522 = vmatprep.subr.mxu0 0.0
    %523 = vmatpush1.msra.mxu0 %v164
    %524 = vmatprep.subr.mxu0 0.0
    %525 = vmatpush1.msra.mxu0 %v163
    %526 = vmatprep.subr.mxu0 0.0
    %527 = vmatpush2.msra.mxu0 0.0
    %528 = vmatprep.subr.mxu0 0.0
    %529 = vmatpush2.msra.mxu0 0.0
    %530 = vmatprep.subr.mxu0 0.0
    %531 = vmatpush2.msra.mxu0 0.0
    %532 = vmatprep.subr.mxu0 0.0
    %533 = vmatpush2.msra.mxu0 0.0
    %534 = vmatprep.subr.mxu0 0.0
    %535 = vmatpush2.msra.mxu0 0.0
    %536 = vmatprep.subr.mxu0 0.0
    %537 = vmatpush2.msra.mxu0 0.0
    %538 = vmatprep.subr.mxu0 0.0
    %539 = vmatpush2.msra.mxu0 0.0
    %540 = vmatprep.subr.mxu0 0.0
    %541 = vmatpush2.msra.mxu0 0.0
    %542 = vmatprep.subr.mxu0 0.0
    %543 = vmatpush2.msra.mxu0 0.0
    %544 = vmatprep.subr.mxu0 0.0
    %545 = vmatpush2.msra.mxu0 0.0
    %546 = vmatprep.subr.mxu0 0.0
    %547 = vmatpush2.msra.mxu0 0.0
    %548 = vmatprep.subr.mxu0 0.0
    %549 = vmatpush2.msra.mxu0 0.0
    %550 = vmatprep.subr.mxu0 0.0
    %551 = vmatpush2.msra.mxu0 0.0
    %552 = vmatprep.subr.mxu0 0.0
    %553 = vmatpush2.msra.mxu0 0.0
    %554 = vmatprep.subr.mxu0 0.0
    %555 = vmatpush2.msra.mxu0 0.0
    %556 = vmatprep.subr.mxu0 0.0
    %557 = vmatpush2.msra.mxu0 0.0
    %558 = vmatprep.mubr.f32.mxu0 0.0
    %559 = vmatmul.mubr.f32.gmra.mxu0 %v492
    %v560 = vpop.f32.mrf.mxu0
    %v561 = vadd.f32 0.0, %v560
    %v562 = vpop.f32.mrf.mxu0
    %563 = vdwg.mxu0
    %v565 = vrot.slane %v561, 5
    %v567 = vadd.f32 %v160, %v565
    %v568 = vxor.u32 %v567, 2147483648
    %v569 = vmul.f32 %v568, 1.442695
    %v570 = vpow.pop %v569
    %v571 = vadd.f32 %v570, 1.0
    %v572 = vrcp.pop %v571
    %v573 = vmul.f32 1.0, %v572
    %v574 = vtanh.pop %v567
    %v576 = vrot.slane %v481, 7
    %v578 = vmul.f32 %v573, %v576
    %580 = vrot.lane.b32.xlu0 %v574, 64
    %v581 = vpop.permute.xlu0 %580
    %v583 = vmul.f32 %v573, %v581
    %585 = vrot.lane.b32.xlu0 %v583, 32
    %v586 = vpop.permute.xlu0 %585
    %v588 = vadd.f32 %v578, %v586
    %v589 = vtanh.pop %v588
    %591 = vrot.lane.b32.xlu0 %v589, 64
    %v592 = vpop.permute.xlu0 %591
    %v594 = vmul.f32 %v573, %v592
    %596 = vrot.lane.b32.xlu0 %v594, 32
    %v597 = vpop.permute.xlu0 %596
    %vm599 = vcmask 257027
    %600 = vst.msk [vmem:[#allocation6 - $0x3] sm:$0x8] %vm599, %v597
    %602 = vrot.lane.b32.xlu0 %v588, 96
    %v603 = vpop.permute.xlu0 %602
    %605 = vst.msk [vmem:[#allocation8 - $0x3] sm:$0x8] %vm599, %v603
    %v606 = vld [vmem:[%s3] sm:$0xff]
    %v607 = vld [vmem:[%s3 + $0x8] sm:$0xff]
    %v608 = vld [vmem:[%s9] sm:$0xff]
    %v609 = vld [vmem:[%s9 + $0x8] sm:$0xff]
    %v610 = vld [vmem:[%s9 + $0x10] sm:$0xff]
    %v611 = vld [vmem:[%s9 + $0x18] sm:$0xff]
    %v612 = vld [vmem:[%s9 + $0x20] sm:$0xff]
    %v613 = vld [vmem:[%s9 + $0x28] sm:$0xff]
    %v614 = vld [vmem:[%s9 + $0x30] sm:$0xff]
    %v615 = vld [vmem:[%s9 + $0x38] sm:$0xff]
    %v616 = vld [vmem:[%s10] sm:$0x1]
    %v618 = vlaneseq
    %v619 = vshrl.u32 %v618, 7
    %v620 = vsub.s32 0, %v619
    %v621 = vrot.slane %v616, %v620
    %vm623 = vcmask 523264
    %v625 = vsel %vm623, %v606, 0
    %v628 = vsel %vm623, %v607, 0
    %630 = vmatprep.subr.mxu0 0.0
    %631 = vmatpush1.msra.mxu0 0.0
    %632 = vmatprep.subr.mxu0 0.0
    %633 = vmatpush1.msra.mxu0 0.0
    %634 = vmatprep.subr.mxu0 0.0
    %635 = vmatpush1.msra.mxu0 0.0
    %636 = vmatprep.subr.mxu0 0.0
    %637 = vmatpush1.msra.mxu0 0.0
    %638 = vmatprep.subr.mxu0 0.0
    %639 = vmatpush1.msra.mxu0 0.0
    %640 = vmatprep.subr.mxu0 0.0
    %641 = vmatpush1.msra.mxu0 0.0
    %642 = vmatprep.subr.mxu0 0.0
    %643 = vmatpush1.msra.mxu0 0.0
    %644 = vmatprep.subr.mxu0 0.0
    %645 = vmatpush1.msra.mxu0 0.0
    %646 = vmatprep.subr.mxu0 0.0
    %647 = vmatpush1.msra.mxu0 %v615
    %648 = vmatprep.subr.mxu0 0.0
    %649 = vmatpush1.msra.mxu0 %v614
    %650 = vmatprep.subr.mxu0 0.0
    %651 = vmatpush1.msra.mxu0 %v613
    %652 = vmatprep.subr.mxu0 0.0
    %653 = vmatpush1.msra.mxu0 %v612
    %654 = vmatprep.subr.mxu0 0.0
    %655 = vmatpush1.msra.mxu0 %v611
    %656 = vmatprep.subr.mxu0 0.0
    %657 = vmatpush1.msra.mxu0 %v610
    %658 = vmatprep.subr.mxu0 0.0
    %659 = vmatpush1.msra.mxu0 %v609
    %660 = vmatprep.subr.mxu0 0.0
    %661 = vmatpush1.msra.mxu0 %v608
    %662 = vmatprep.subr.mxu0 0.0
    %663 = vmatpush2.msra.mxu0 0.0
    %664 = vmatprep.subr.mxu0 0.0
    %665 = vmatpush2.msra.mxu0 0.0
    %666 = vmatprep.subr.mxu0 0.0
    %667 = vmatpush2.msra.mxu0 0.0
    %668 = vmatprep.subr.mxu0 0.0
    %669 = vmatpush2.msra.mxu0 0.0
    %670 = vmatprep.subr.mxu0 0.0
    %671 = vmatpush2.msra.mxu0 0.0
    %672 = vmatprep.subr.mxu0 0.0
    %673 = vmatpush2.msra.mxu0 0.0
    %674 = vmatprep.subr.mxu0 0.0
    %675 = vmatpush2.msra.mxu0 0.0
    %676 = vmatprep.subr.mxu0 0.0
    %677 = vmatpush2.msra.mxu0 0.0
    %678 = vmatprep.subr.mxu0 0.0
    %679 = vmatpush2.msra.mxu0 0.0
    %680 = vmatprep.subr.mxu0 0.0
    %681 = vmatpush2.msra.mxu0 0.0
    %682 = vmatprep.subr.mxu0 0.0
    %683 = vmatpush2.msra.mxu0 0.0
    %684 = vmatprep.subr.mxu0 0.0
    %685 = vmatpush2.msra.mxu0 0.0
    %686 = vmatprep.subr.mxu0 0.0
    %687 = vmatpush2.msra.mxu0 0.0
    %688 = vmatprep.subr.mxu0 0.0
    %689 = vmatpush2.msra.mxu0 0.0
    %690 = vmatprep.subr.mxu0 0.0
    %691 = vmatpush2.msra.mxu0 0.0
    %692 = vmatprep.subr.mxu0 0.0
    %693 = vmatpush2.msra.mxu0 0.0
    %694 = vmatprep.mubr.f32.mxu0 0.0
    %695 = vmatmul.mubr.f32.gmra.mxu0 %v625
    %v696 = vpop.f32.mrf.mxu0
    %v697 = vadd.f32 %v621, %v696
    %v698 = vpop.f32.mrf.mxu0
    %699 = vmatprep.mubr.f32.mxu0 0.0
    %700 = vmatmul.mubr.f32.gmra.mxu0 %v628
    %v701 = vpop.f32.mrf.mxu0
    %v702 = vadd.f32 %v621, %v701
    %v703 = vpop.f32.mrf.mxu0
    %704 = vdwg.mxu0
    %v705 = vld [vmem:[%s11] sm:$0xff]
    %v706 = vld [vmem:[%s11 + $0x8] sm:$0xff]
    %v707 = vld [vmem:[%s11 + $0x10] sm:$0xff]
    %v708 = vld [vmem:[%s11 + $0x18] sm:$0xff]
    %v709 = vld [vmem:[%s12] sm:$0x1]
    %v710 = vrot.slane %v594, 3
    %711 = vrot.lane.b32.xlu0 %v710, 32
    %v712 = vpop.permute.xlu0 %711
    %v713 = vsel %vm89, %v712, 0
    %715 = vmatprep.subr.mxu0 0.0
    %716 = vmatpush1.msra.mxu0 0.0
    %717 = vmatprep.subr.mxu0 0.0
    %718 = vmatpush1.msra.mxu0 0.0
    %719 = vmatprep.subr.mxu0 0.0
    %720 = vmatpush1.msra.mxu0 0.0
    %721 = vmatprep.subr.mxu0 0.0
    %722 = vmatpush1.msra.mxu0 0.0
    %723 = vmatprep.subr.mxu0 0.0
    %724 = vmatpush1.msra.mxu0 0.0
    %725 = vmatprep.subr.mxu0 0.0
    %726 = vmatpush1.msra.mxu0 0.0
    %727 = vmatprep.subr.mxu0 0.0
    %728 = vmatpush1.msra.mxu0 0.0
    %729 = vmatprep.subr.mxu0 0.0
    %730 = vmatpush1.msra.mxu0 0.0
    %731 = vmatprep.subr.mxu0 0.0
    %732 = vmatpush1.msra.mxu0 0.0
    %733 = vmatprep.subr.mxu0 0.0
    %734 = vmatpush1.msra.mxu0 0.0
    %735 = vmatprep.subr.mxu0 0.0
    %736 = vmatpush1.msra.mxu0 0.0
    %737 = vmatprep.subr.mxu0 0.0
    %738 = vmatpush1.msra.mxu0 0.0
    %739 = vmatprep.subr.mxu0 0.0
    %740 = vmatpush1.msra.mxu0 %v708
    %741 = vmatprep.subr.mxu0 0.0
    %742 = vmatpush1.msra.mxu0 %v707
    %743 = vmatprep.subr.mxu0 0.0
    %744 = vmatpush1.msra.mxu0 %v706
    %745 = vmatprep.subr.mxu0 0.0
    %746 = vmatpush1.msra.mxu0 %v705
    %747 = vmatprep.subr.mxu0 0.0
    %748 = vmatpush2.msra.mxu0 0.0
    %749 = vmatprep.subr.mxu0 0.0
    %750 = vmatpush2.msra.mxu0 0.0
    %751 = vmatprep.subr.mxu0 0.0
    %752 = vmatpush2.msra.mxu0 0.0
    %753 = vmatprep.subr.mxu0 0.0
    %754 = vmatpush2.msra.mxu0 0.0
    %755 = vmatprep.subr.mxu0 0.0
    %756 = vmatpush2.msra.mxu0 0.0
    %757 = vmatprep.subr.mxu0 0.0
    %758 = vmatpush2.msra.mxu0 0.0
    %759 = vmatprep.subr.mxu0 0.0
    %760 = vmatpush2.msra.mxu0 0.0
    %761 = vmatprep.subr.mxu0 0.0
    %762 = vmatpush2.msra.mxu0 0.0
    %763 = vmatprep.subr.mxu0 0.0
    %764 = vmatpush2.msra.mxu0 0.0
    %765 = vmatprep.subr.mxu0 0.0
    %766 = vmatpush2.msra.mxu0 0.0
    %767 = vmatprep.subr.mxu0 0.0
    %768 = vmatpush2.msra.mxu0 0.0
    %769 = vmatprep.subr.mxu0 0.0
    %770 = vmatpush2.msra.mxu0 0.0
    %771 = vmatprep.subr.mxu0 0.0
    %772 = vmatpush2.msra.mxu0 0.0
    %773 = vmatprep.subr.mxu0 0.0
    %774 = vmatpush2.msra.mxu0 0.0
    %775 = vmatprep.subr.mxu0 0.0
    %776 = vmatpush2.msra.mxu0 0.0
    %777 = vmatprep.subr.mxu0 0.0
    %778 = vmatpush2.msra.mxu0 0.0
    %779 = vmatprep.mubr.f32.mxu0 0.0
    %780 = vmatmul.mubr.f32.gmra.mxu0 %v713
    %v781 = vpop.f32.mrf.mxu0
    %v782 = vadd.f32 %v709, %v781
    %v783 = vpop.f32.mrf.mxu0
    %784 = vdwg.mxu0
    %v785 = vlaneseq
    %v786 = vshrl.u32 %v785, 7
    %v787 = vsub.s32 0, %v786
    %v788 = vrot.slane %v782, %v787
    %v789 = vadd.f32 %v697, %v788
    %v790 = vadd.f32 %v702, %v788
    %v791 = vtanh.pop %v789
    %v792 = vtanh.pop %v790
    %v793 = vld [vmem:[%s13] sm:$0x1]
    %v794 = vld [vmem:[#allocation3] sm:$0x1]
    %796 = vset.pattern.permute.xlu0 0
    %797 = vperm.xlu0 %796, %v794
    %v798 = vpop.permute.xlu0 %797
    %v800 = vlaneseq
    %v801 = vshrl.u32 %v800, 7
    %v802 = vsub.s32 0, %v801
    %v803 = vrot.slane %v798, %v802
    %v805 = vsel %vm89, %v793, 0
    %v808 = vsel %vm89, %v791, 0
    %v811 = vsel %vm89, %v792, 0
    %813 = vmatprep.subr.mxu0 0.0
    %814 = vmatpush1.xpose.msra.mxu0 0.0
    %815 = vmatprep.subr.mxu0 0.0
    %816 = vmatpush1.xpose.msra.mxu0 0.0
    %817 = vmatprep.subr.mxu0 0.0
    %818 = vmatpush1.xpose.msra.mxu0 0.0
    %819 = vmatprep.subr.mxu0 0.0
    %820 = vmatpush1.xpose.msra.mxu0 0.0
    %821 = vmatprep.subr.mxu0 0.0
    %822 = vmatpush1.xpose.msra.mxu0 0.0
    %823 = vmatprep.subr.mxu0 0.0
    %824 = vmatpush1.xpose.msra.mxu0 0.0
    %825 = vmatprep.subr.mxu0 0.0
    %826 = vmatpush1.xpose.msra.mxu0 0.0
    %827 = vmatprep.subr.mxu0 0.0
    %828 = vmatpush1.xpose.msra.mxu0 0.0
    %829 = vmatprep.subr.mxu0 0.0
    %830 = vmatpush1.xpose.msra.mxu0 0.0
    %831 = vmatprep.subr.mxu0 0.0
    %832 = vmatpush1.xpose.msra.mxu0 0.0
    %833 = vmatprep.subr.mxu0 0.0
    %834 = vmatpush1.xpose.msra.mxu0 0.0
    %835 = vmatprep.subr.mxu0 0.0
    %836 = vmatpush1.xpose.msra.mxu0 0.0
    %837 = vmatprep.subr.mxu0 0.0
    %838 = vmatpush1.xpose.msra.mxu0 0.0
    %839 = vmatprep.subr.mxu0 0.0
    %840 = vmatpush1.xpose.msra.mxu0 0.0
    %841 = vmatprep.subr.mxu0 0.0
    %842 = vmatpush1.xpose.msra.mxu0 %v811
    %843 = vmatprep.subr.mxu0 0.0
    %844 = vmatpush1.xpose.msra.mxu0 %v808
    %845 = vmatprep.subr.mxu0 0.0
    %846 = vmatpush2.xpose.msra.mxu0 0.0
    %847 = vmatprep.subr.mxu0 0.0
    %848 = vmatpush2.xpose.msra.mxu0 0.0
    %849 = vmatprep.subr.mxu0 0.0
    %850 = vmatpush2.xpose.msra.mxu0 0.0
    %851 = vmatprep.subr.mxu0 0.0
    %852 = vmatpush2.xpose.msra.mxu0 0.0
    %853 = vmatprep.subr.mxu0 0.0
    %854 = vmatpush2.xpose.msra.mxu0 0.0
    %855 = vmatprep.subr.mxu0 0.0
    %856 = vmatpush2.xpose.msra.mxu0 0.0
    %857 = vmatprep.subr.mxu0 0.0
    %858 = vmatpush2.xpose.msra.mxu0 0.0
    %859 = vmatprep.subr.mxu0 0.0
    %860 = vmatpush2.xpose.msra.mxu0 0.0
    %861 = vmatprep.subr.mxu0 0.0
    %862 = vmatpush2.xpose.msra.mxu0 0.0
    %863 = vmatprep.subr.mxu0 0.0
    %864 = vmatpush2.xpose.msra.mxu0 0.0
    %865 = vmatprep.subr.mxu0 0.0
    %866 = vmatpush2.xpose.msra.mxu0 0.0
    %867 = vmatprep.subr.mxu0 0.0
    %868 = vmatpush2.xpose.msra.mxu0 0.0
    %869 = vmatprep.subr.mxu0 0.0
    %870 = vmatpush2.xpose.msra.mxu0 0.0
    %871 = vmatprep.subr.mxu0 0.0
    %872 = vmatpush2.xpose.msra.mxu0 0.0
    %873 = vmatprep.subr.mxu0 0.0
    %874 = vmatpush2.xpose.msra.mxu0 0.0
    %875 = vmatprep.subr.mxu0 0.0
    %876 = vmatpush2.xpose.msra.mxu0 0.0
    %877 = vmatprep.mubr.f32.mxu0 0.0
    %878 = vmatmul.mubr.f32.gmra.mxu0 %v805
    %v879 = vpop.f32.mrf.mxu0
    %v880 = vadd.f32 %v803, %v879
    %v881 = vpop.f32.mrf.mxu0
    %882 = vdwg.mxu0
    %v883 = vsel %vm75, %v880, -inf
    %884 = vmax.xlane.f32.xlu0 %v883
    %v885 = vpop.xlane.xlu0 %884
    %v886 = vsub.f32 %v880, %v885
    %v887 = vmul.f32 %v886, 1.442695
    %v888 = vpow.pop %v887
    %v889 = vsel %vm75, %v888, 0.0
    %890 = vadd.xlane.f32.xlu0 %v889
    %v891 = vpop.xlane.xlu0 %890
    %v892 = vrcp.pop %v891
    %v893 = vmul.f32 %v888, %v892
    %894 = vst.msk [vmem:[#allocation9] sm:$0x1] %vm75, %v893
    %vm895 = vcmask 130048
    %v897 = vsel %vm895, %v893, 0
    %899 = vmatprep.subr.mxu0 0.0
    %900 = vmatpush1.msra.mxu0 0.0
    %901 = vmatprep.subr.mxu0 0.0
    %902 = vmatpush1.msra.mxu0 0.0
    %903 = vmatprep.subr.mxu0 0.0
    %904 = vmatpush1.msra.mxu0 0.0
    %905 = vmatprep.subr.mxu0 0.0
    %906 = vmatpush1.msra.mxu0 0.0
    %907 = vmatprep.subr.mxu0 0.0
    %908 = vmatpush1.msra.mxu0 0.0
    %909 = vmatprep.subr.mxu0 0.0
    %910 = vmatpush1.msra.mxu0 0.0
    %911 = vmatprep.subr.mxu0 0.0
    %912 = vmatpush1.msra.mxu0 0.0
    %913 = vmatprep.subr.mxu0 0.0
    %914 = vmatpush1.msra.mxu0 0.0
    %915 = vmatprep.subr.mxu0 0.0
    %916 = vmatpush1.msra.mxu0 0.0
    %917 = vmatprep.subr.mxu0 0.0
    %918 = vmatpush1.msra.mxu0 0.0
    %919 = vmatprep.subr.mxu0 0.0
    %920 = vmatpush1.msra.mxu0 0.0
    %921 = vmatprep.subr.mxu0 0.0
    %922 = vmatpush1.msra.mxu0 0.0
    %923 = vmatprep.subr.mxu0 0.0
    %924 = vmatpush1.msra.mxu0 0.0
    %925 = vmatprep.subr.mxu0 0.0
    %926 = vmatpush1.msra.mxu0 0.0
    %927 = vmatprep.subr.mxu0 0.0
    %928 = vmatpush1.msra.mxu0 %v607
    %929 = vmatprep.subr.mxu0 0.0
    %930 = vmatpush1.msra.mxu0 %v606
    %931 = vmatprep.subr.mxu0 0.0
    %932 = vmatpush2.msra.mxu0 0.0
    %933 = vmatprep.subr.mxu0 0.0
    %934 = vmatpush2.msra.mxu0 0.0
    %935 = vmatprep.subr.mxu0 0.0
    %936 = vmatpush2.msra.mxu0 0.0
    %937 = vmatprep.subr.mxu0 0.0
    %938 = vmatpush2.msra.mxu0 0.0
    %939 = vmatprep.subr.mxu0 0.0
    %940 = vmatpush2.msra.mxu0 0.0
    %941 = vmatprep.subr.mxu0 0.0
    %942 = vmatpush2.msra.mxu0 0.0
    %943 = vmatprep.subr.mxu0 0.0
    %944 = vmatpush2.msra.mxu0 0.0
    %945 = vmatprep.subr.mxu0 0.0
    %946 = vmatpush2.msra.mxu0 0.0
    %947 = vmatprep.subr.mxu0 0.0
    %948 = vmatpush2.msra.mxu0 0.0
    %949 = vmatprep.subr.mxu0 0.0
    %950 = vmatpush2.msra.mxu0 0.0
    %951 = vmatprep.subr.mxu0 0.0
    %952 = vmatpush2.msra.mxu0 0.0
    %953 = vmatprep.subr.mxu0 0.0
    %954 = vmatpush2.msra.mxu0 0.0
    %955 = vmatprep.subr.mxu0 0.0
    %956 = vmatpush2.msra.mxu0 0.0
    %957 = vmatprep.subr.mxu0 0.0
    %958 = vmatpush2.msra.mxu0 0.0
    %959 = vmatprep.subr.mxu0 0.0
    %960 = vmatpush2.msra.mxu0 0.0
    %961 = vmatprep.subr.mxu0 0.0
    %962 = vmatpush2.msra.mxu0 0.0
    %963 = vmatprep.mubr.f32.mxu0 0.0
    %964 = vmatmul.mubr.f32.gmra.mxu0 %v897
    %v965 = vpop.f32.mrf.mxu0
    %v966 = vadd.f32 0.0, %v965
    %v967 = vpop.f32.mrf.mxu0
    %968 = vdwg.mxu0
    %969 = vst.msk [vmem:[#allocation2 - $0x3] sm:$0x8] %vm599, %v597
    %971 = vrot.lane.b32.xlu0 %v966, 32
    %v972 = vpop.permute.xlu0 %971
    %vm974 = vcmask 778496
    %975 = vst.msk [vmem:[#allocation2] sm:$0x1] %vm974, %v972
    %v976 = vld [vmem:[#allocation2] sm:$0x1]
    %v977 = vld [vmem:[%s15] sm:$0xff]
    %v978 = vld [vmem:[%s15 + $0x8] sm:$0xff]
    %v979 = vld [vmem:[%s15 + $0x10] sm:$0xff]
    %v980 = vld [vmem:[%s15 + $0x18] sm:$0xff]
    %v981 = vld [vmem:[%s15 + $0x20] sm:$0xff]
    %v982 = vld [vmem:[%s15 + $0x28] sm:$0xff]
    %v983 = vld [vmem:[%s15 + $0x30] sm:$0xff]
    %v984 = vld [vmem:[%s15 + $0x38] sm:$0xff]
    %v985 = vld [vmem:[%s15 + $0x40] sm:$0xff]
    %v986 = vld [vmem:[%s15 + $0x48] sm:$0xff]
    %v987 = vld [vmem:[%s15 + $0x50] sm:$0xff]
    %v988 = vld [vmem:[%s15 + $0x58] sm:$0xff]
    %v989 = vld [vmem:[%s16] sm:$0x1]
    %vm990 = vcmask 785408
    %v992 = vsel %vm990, %v976, 0
    %994 = vmatprep.subr.mxu0 0.0
    %995 = vmatpush1.msra.mxu0 0.0
    %996 = vmatprep.subr.mxu0 0.0
    %997 = vmatpush1.msra.mxu0 0.0
    %998 = vmatprep.subr.mxu0 0.0
    %999 = vmatpush1.msra.mxu0 0.0
    %1000 = vmatprep.subr.mxu0 0.0
    %1001 = vmatpush1.msra.mxu0 0.0
    %1002 = vmatprep.subr.mxu0 0.0
    %1003 = vmatpush1.msra.mxu0 %v988
    %1004 = vmatprep.subr.mxu0 0.0
    %1005 = vmatpush1.msra.mxu0 %v987
    %1006 = vmatprep.subr.mxu0 0.0
    %1007 = vmatpush1.msra.mxu0 %v986
    %1008 = vmatprep.subr.mxu0 0.0
    %1009 = vmatpush1.msra.mxu0 %v985
    %1010 = vmatprep.subr.mxu0 0.0
    %1011 = vmatpush1.msra.mxu0 %v984
    %1012 = vmatprep.subr.mxu0 0.0
    %1013 = vmatpush1.msra.mxu0 %v983
    %1014 = vmatprep.subr.mxu0 0.0
    %1015 = vmatpush1.msra.mxu0 %v982
    %1016 = vmatprep.subr.mxu0 0.0
    %1017 = vmatpush1.msra.mxu0 %v981
    %1018 = vmatprep.subr.mxu0 0.0
    %1019 = vmatpush1.msra.mxu0 %v980
    %1020 = vmatprep.subr.mxu0 0.0
    %1021 = vmatpush1.msra.mxu0 %v979
    %1022 = vmatprep.subr.mxu0 0.0
    %1023 = vmatpush1.msra.mxu0 %v978
    %1024 = vmatprep.subr.mxu0 0.0
    %1025 = vmatpush1.msra.mxu0 %v977
    %1026 = vmatprep.subr.mxu0 0.0
    %1027 = vmatpush2.msra.mxu0 0.0
    %1028 = vmatprep.subr.mxu0 0.0
    %1029 = vmatpush2.msra.mxu0 0.0
    %1030 = vmatprep.subr.mxu0 0.0
    %1031 = vmatpush2.msra.mxu0 0.0
    %1032 = vmatprep.subr.mxu0 0.0
    %1033 = vmatpush2.msra.mxu0 0.0
    %1034 = vmatprep.subr.mxu0 0.0
    %1035 = vmatpush2.msra.mxu0 0.0
    %1036 = vmatprep.subr.mxu0 0.0
    %1037 = vmatpush2.msra.mxu0 0.0
    %1038 = vmatprep.subr.mxu0 0.0
    %1039 = vmatpush2.msra.mxu0 0.0
    %1040 = vmatprep.subr.mxu0 0.0
    %1041 = vmatpush2.msra.mxu0 0.0
    %1042 = vmatprep.subr.mxu0 0.0
    %1043 = vmatpush2.msra.mxu0 0.0
    %1044 = vmatprep.subr.mxu0 0.0
    %1045 = vmatpush2.msra.mxu0 0.0
    %1046 = vmatprep.subr.mxu0 0.0
    %1047 = vmatpush2.msra.mxu0 0.0
    %1048 = vmatprep.subr.mxu0 0.0
    %1049 = vmatpush2.msra.mxu0 0.0
    %1050 = vmatprep.subr.mxu0 0.0
    %1051 = vmatpush2.msra.mxu0 0.0
    %1052 = vmatprep.subr.mxu0 0.0
    %1053 = vmatpush2.msra.mxu0 0.0
    %1054 = vmatprep.subr.mxu0 0.0
    %1055 = vmatpush2.msra.mxu0 0.0
    %1056 = vmatprep.subr.mxu0 0.0
    %1057 = vmatpush2.msra.mxu0 0.0
    %1058 = vmatprep.mubr.f32.mxu0 0.0
    %1059 = vmatmul.mubr.f32.gmra.mxu0 %v992
    %v1060 = vpop.f32.mrf.mxu0
    %v1061 = vadd.f32 %v989, %v1060
    %v1062 = vpop.f32.mrf.mxu0
    %1063 = vdwg.mxu0
    %v1064 = vld [vmem:[%s17] sm:$0xff]
    %v1065 = vld [vmem:[%s17 + $0x8] sm:$0xff]
    %v1066 = vld [vmem:[%s17 + $0x10] sm:$0xff]
    %v1067 = vld [vmem:[%s17 + $0x18] sm:$0xff]
    %v1068 = vld [vmem:[%s18] sm:$0x1]
    %v1070 = vsel %vm89, %v1061, 0
    %1072 = vmatprep.subr.mxu0 0.0
    %1073 = vmatpush1.msra.mxu0 0.0
    %1074 = vmatprep.subr.mxu0 0.0
    %1075 = vmatpush1.msra.mxu0 0.0
    %1076 = vmatprep.subr.mxu0 0.0
    %1077 = vmatpush1.msra.mxu0 0.0
    %1078 = vmatprep.subr.mxu0 0.0
    %1079 = vmatpush1.msra.mxu0 0.0
    %1080 = vmatprep.subr.mxu0 0.0
    %1081 = vmatpush1.msra.mxu0 0.0
    %1082 = vmatprep.subr.mxu0 0.0
    %1083 = vmatpush1.msra.mxu0 0.0
    %1084 = vmatprep.subr.mxu0 0.0
    %1085 = vmatpush1.msra.mxu0 0.0
    %1086 = vmatprep.subr.mxu0 0.0
    %1087 = vmatpush1.msra.mxu0 0.0
    %1088 = vmatprep.subr.mxu0 0.0
    %1089 = vmatpush1.msra.mxu0 0.0
    %1090 = vmatprep.subr.mxu0 0.0
    %1091 = vmatpush1.msra.mxu0 0.0
    %1092 = vmatprep.subr.mxu0 0.0
    %1093 = vmatpush1.msra.mxu0 0.0
    %1094 = vmatprep.subr.mxu0 0.0
    %1095 = vmatpush1.msra.mxu0 0.0
    %1096 = vmatprep.subr.mxu0 0.0
    %1097 = vmatpush1.msra.mxu0 %v1067
    %1098 = vmatprep.subr.mxu0 0.0
    %1099 = vmatpush1.msra.mxu0 %v1066
    %1100 = vmatprep.subr.mxu0 0.0
    %1101 = vmatpush1.msra.mxu0 %v1065
    %1102 = vmatprep.subr.mxu0 0.0
    %1103 = vmatpush1.msra.mxu0 %v1064
    %1104 = vmatprep.subr.mxu0 0.0
    %1105 = vmatpush2.msra.mxu0 0.0
    %1106 = vmatprep.subr.mxu0 0.0
    %1107 = vmatpush2.msra.mxu0 0.0
    %1108 = vmatprep.subr.mxu0 0.0
    %1109 = vmatpush2.msra.mxu0 0.0
    %1110 = vmatprep.subr.mxu0 0.0
    %1111 = vmatpush2.msra.mxu0 0.0
    %1112 = vmatprep.subr.mxu0 0.0
    %1113 = vmatpush2.msra.mxu0 0.0
    %1114 = vmatprep.subr.mxu0 0.0
    %1115 = vmatpush2.msra.mxu0 0.0
    %1116 = vmatprep.subr.mxu0 0.0
    %1117 = vmatpush2.msra.mxu0 0.0
    %1118 = vmatprep.subr.mxu0 0.0
    %1119 = vmatpush2.msra.mxu0 0.0
    %1120 = vmatprep.subr.mxu0 0.0
    %1121 = vmatpush2.msra.mxu0 0.0
    %1122 = vmatprep.subr.mxu0 0.0
    %1123 = vmatpush2.msra.mxu0 0.0
    %1124 = vmatprep.subr.mxu0 0.0
    %1125 = vmatpush2.msra.mxu0 0.0
    %1126 = vmatprep.subr.mxu0 0.0
    %1127 = vmatpush2.msra.mxu0 0.0
    %1128 = vmatprep.subr.mxu0 0.0
    %1129 = vmatpush2.msra.mxu0 0.0
    %1130 = vmatprep.subr.mxu0 0.0
    %1131 = vmatpush2.msra.mxu0 0.0
    %1132 = vmatprep.subr.mxu0 0.0
    %1133 = vmatpush2.msra.mxu0 0.0
    %1134 = vmatprep.subr.mxu0 0.0
    %1135 = vmatpush2.msra.mxu0 0.0
    %1136 = vmatprep.mubr.f32.mxu0 0.0
    %1137 = vmatmul.mubr.f32.gmra.mxu0 %v1070
    %v1138 = vpop.f32.mrf.mxu0
    %v1139 = vadd.f32 %v1068, %v1138
    %v1140 = vpop.f32.mrf.mxu0
    %1141 = vdwg.mxu0
    %vm1142 = vcmask 1040384
    %v1143 = vsel %vm1142, %v1139, -inf
    %1144 = vmax.xlane.f32.xlu0 %v1143
    %v1145 = vpop.xlane.xlu0 %1144
    %v1146 = vsub.f32 %v1139, %v1145
    %v1147 = vmul.f32 %v1146, 1.442695
    %v1148 = vpow.pop %v1147
    %v1149 = vsel %vm1142, %v1148, 0.0
    %1150 = vadd.xlane.f32.xlu0 %v1149
    %v1151 = vpop.xlane.xlu0 %1150
    %v1152 = vrcp.pop %v1151
    %v1153 = vmul.f32 %v1148, %v1152
    %1154 = vst [vmem:[#allocation4] sm:$0x1] %v1153
    // Predicated region
    $region78: #{tpu_custom_call.1} parent=1 // pred_check
      _
    $region79: #{tpu_custom_call.1} parent=1 // pred_check_branch
      %1156 = sbr.rel (0) target = $region81
    $region80: #{tpu_custom_call.1} parent=1 // pred_region
      %s1158 = ssub.s32 16, 16
      %1159 = vsyncadd [#allocation5], %s1158
      %s1161 = sshll.u32 [#allocation4], 4
      %s1162 = int_to_ptr.vmem [resolvable:$true] %s1161
      %1164 = dma.vmem_to_hbm [thread:$0]  %s1162, 16, %s19, [#allocation5]
    $region81: #{tpu_custom_call.1} parent=1 // pred_fallthru
      _
    // Predicated region
    $region82: #{tpu_custom_call.1} parent=1 // pred_check
      _
    $region83: #{tpu_custom_call.1} parent=1 // pred_check_branch
      %1166 = sbr.rel (0) target = $region85
    $region84: #{tpu_custom_call.1} parent=1 // pred_region
      %s1168 = ssub.s32 16, 16
      %1169 = vsyncadd [#allocation7], %s1168
      %s1171 = sshll.u32 [#allocation6], 4
      %s1172 = int_to_ptr.vmem [resolvable:$true] %s1171
      %1174 = dma.vmem_to_hbm [thread:$0]  %s1172, 16, %s20, [#allocation7]
    $region85: #{tpu_custom_call.1} parent=1 // pred_fallthru
      _
    // Predicated region
    $region86: #{tpu_custom_call.1} parent=1 // pred_check
      _
    $region87: #{tpu_custom_call.1} parent=1 // pred_check_branch
      %1176 = sbr.rel (0) target = $region89
    $region88: #{tpu_custom_call.1} parent=1 // pred_region
      %s1178 = ssub.s32 16, 16
      %1179 = vsyncadd [#allocation7], %s1178
      %s1181 = sshll.u32 [#allocation8], 4
      %s1182 = int_to_ptr.vmem [resolvable:$true] %s1181
      %1184 = dma.vmem_to_hbm [thread:$0]  %s1182, 16, %s21, [#allocation7]
    $region89: #{tpu_custom_call.1} parent=1 // pred_fallthru
      _
    // Predicated region
    $region90: #{tpu_custom_call.1} parent=1 // pred_check
      _
    $region91: #{tpu_custom_call.1} parent=1 // pred_check_branch
      %1186 = sbr.rel (0) target = $region93
    $region92: #{tpu_custom_call.1} parent=1 // pred_region
      %s1188 = ssub.s32 16, 16
      %1189 = vsyncadd [#allocation10], %s1188
      %s1191 = sshll.u32 [#allocation9], 4
      %s1192 = int_to_ptr.vmem [resolvable:$true] %s1191
      %1194 = dma.vmem_to_hbm [thread:$0]  %s1192, 16, %s22, [#allocation10]
    $region93: #{tpu_custom_call.1} parent=1 // pred_fallthru
      _
    // Predicated region
    $region94: #{tpu_custom_call.1} parent=1 // pred_check
      _
    $region95: #{tpu_custom_call.1} parent=1 // pred_check_branch
      %1196 = sbr.rel (0) target = $region97
    $region96: #{tpu_custom_call.1} parent=1 // pred_region
      %s1198 = ssub.s32 16, 16
      %1199 = vsyncadd [#allocation10], %s1198
      %s1201 = sshll.u32 [#allocation11], 4
      %s1202 = int_to_ptr.vmem [resolvable:$true] %s1201
      %1204 = dma.vmem_to_hbm [thread:$0]  %s1202, 16, %s23, [#allocation10]
    $region97: #{tpu_custom_call.1} parent=1 // pred_fallthru
      _
    // Predicated region
    $region98: #{tpu_custom_call.1} parent=1 // pred_check
      _
    $region99: #{tpu_custom_call.1} parent=1 // pred_check_branch
      %1206 = sbr.rel (0) target = $region101
    $region100: #{tpu_custom_call.1} parent=1 // pred_region
      %1207 = dma.done [#allocation5], 16
    $region101: #{tpu_custom_call.1} parent=1 // pred_fallthru
      _
    // Predicated region
    $region102: #{tpu_custom_call.1} parent=1 // pred_check
      _
    $region103: #{tpu_custom_call.1} parent=1 // pred_check_branch
      %1209 = sbr.rel (0) target = $region105
    $region104: #{tpu_custom_call.1} parent=1 // pred_region
      %1210 = dma.done [#allocation7], 16
    $region105: #{tpu_custom_call.1} parent=1 // pred_fallthru
      _
    // Predicated region
    $region106: #{tpu_custom_call.1} parent=1 // pred_check
      _
    $region107: #{tpu_custom_call.1} parent=1 // pred_check_branch
      %1212 = sbr.rel (0) target = $region109
    $region108: #{tpu_custom_call.1} parent=1 // pred_region
      %1213 = dma.done [#allocation7], 16
    $region109: #{tpu_custom_call.1} parent=1 // pred_fallthru
      _
    // Predicated region
    $region110: #{tpu_custom_call.1} parent=1 // pred_check
      _
    $region111: #{tpu_custom_call.1} parent=1 // pred_check_branch
      %1215 = sbr.rel (0) target = $region113
    $region112: #{tpu_custom_call.1} parent=1 // pred_region
      %1216 = dma.done [#allocation10], 16
    $region113: #{tpu_custom_call.1} parent=1 // pred_fallthru
      _
    // Predicated region
    $region114: #{tpu_custom_call.1} parent=1 // pred_check
      _
    $region115: #{tpu_custom_call.1} parent=1 // pred_check_branch
      %1218 = sbr.rel (0) target = $region117
    $region116: #{tpu_custom_call.1} parent=1 // pred_region
      %1219 = dma.done [#allocation10], 16
    $region117: #{tpu_custom_call.1} parent=1 // pred_fallthru
      _
    %1220 = vsyncpa [#allocation5], 1
    %1221 = vsyncpa [#allocation7], 1
    %1222 = vsyncpa [#allocation10], 1

</llo_original>
